<compile_context>
chip_gen: v7x
topology: tpu7x:2x2x1
jax: 0.10.0
libtpu: 0.0.40
codegen_flags: <defaults>
</compile_context>

<pallas_src>
import functools

import jax
import jax.numpy as jnp
from jax.experimental import pallas as pl
from jax.experimental.pallas import tpu as pltpu

K = 5                       # conv kernel size (both convs)
C_IN, C1, C2 = 3, 6, 16     # channel sizes
H_IN = W_IN = 32            # input spatial size implied by fc1 = 16*5*5


def _vmem_spec():
    return pl.BlockSpec(memory_space=pltpu.MemorySpace.VMEM)


# ---------------------------------------------------------------------------
# Kernel 1: conv1 + bias + ReLU + 2x2/2 max-pool, fully fused.
# ---------------------------------------------------------------------------
def _conv1_pool_kernel(p_ref, w_ref, b_ref, o_ref):
    # p_ref: (4, 75, M) bf16  im2col patches, one slab per 2x2-pool offset,
    #                         lanes = n*196 + ph*14 + pw (pooled spatial index)
    # w_ref: (6, 75)    bf16  conv1 weight, contraction idx = c*25 + kh*5 + kw
    # b_ref: (6, 1)     f32
    # o_ref: (6, M)     bf16  pooled ReLU activation, lane-dense output
    w = w_ref[...]
    acc = jnp.dot(w, p_ref[0], preferred_element_type=jnp.float32)
    for d in range(1, 4):
        acc = jnp.maximum(acc, jnp.dot(w, p_ref[d],
                                       preferred_element_type=jnp.float32))
    # ReLU(max_d(pre_act_d) + b) == pool(ReLU(conv + b)) since bias is shared
    # per-channel and ReLU is monotonic.
    o_ref[...] = jnp.maximum(acc + b_ref[...], 0.0).astype(o_ref.dtype)


# ---------------------------------------------------------------------------
# Kernel 2: conv2 + bias + ReLU + pool + fc1 + fc2 + fc3, fused (all in VMEM).
# ---------------------------------------------------------------------------
def _conv2_pool_fc_kernel(n, p_ref, w2_ref, b2_ref, wf1_ref, bf1_ref,
                          wf2_ref, bf2_ref, wf3_ref, bf3_ref,
                          o_ref, h2_scr, flat_scr):
    # p_ref : (4, 25*n, 150) bf16  rows = p*n + image  (p = ph2*5 + pw2)
    # w2_ref: (150, 16) bf16 ; b2_ref: (1, 16) f32
    # wf1_ref: (400, 120) bf16 (input dim permuted to (p, c)); bf1_ref: (1,120) f32
    # wf2_ref: (120, 84) bf16 ; bf2_ref: (1, 84) f32
    # wf3_ref: (84, 10)  bf16 ; bf3_ref: (1, 10) f32
    # o_ref : (n, 10) f32
    # h2_scr: (25*n, 16) f32 VMEM scratch ; flat_scr: (n, 400) f32 VMEM scratch
    w2 = w2_ref[...]
    acc = jnp.dot(p_ref[0], w2, preferred_element_type=jnp.float32)
    for d in range(1, 4):
        acc = jnp.maximum(acc, jnp.dot(p_ref[d], w2,
                                       preferred_element_type=jnp.float32))
    h2_scr[...] = jnp.maximum(acc + b2_ref[...], 0.0)        # pooled conv2 (25n, 16)

    # torch's .view(-1, 400): regroup (pool-position, image) rows into per-image
    # 400-wide rows (column order p*16 + c, matched by the permuted fc1 weight).
    # Done with plain VMEM loads/stores -- no in-kernel reshape/gather needed.
    for p in range(25):
        flat_scr[:, p * C2:(p + 1) * C2] = h2_scr[p * n:(p + 1) * n, :]
    flat = flat_scr[...].astype(jnp.bfloat16)                 # (n, 400)

    a1 = jnp.dot(flat, wf1_ref[...], preferred_element_type=jnp.float32) + bf1_ref[...]
    h3 = jnp.maximum(a1, 0.0).astype(jnp.bfloat16)            # (n, 120)
    a2 = jnp.dot(h3, wf2_ref[...], preferred_element_type=jnp.float32) + bf2_ref[...]
    h4 = jnp.maximum(a2, 0.0).astype(jnp.bfloat16)            # (n, 84)
    a3 = jnp.dot(h4, wf3_ref[...], preferred_element_type=jnp.float32) + bf3_ref[...]
    o_ref[...] = a3.astype(o_ref.dtype)


# ---------------------------------------------------------------------------
# Forward pass
# ---------------------------------------------------------------------------
def convnet_forward(x, params):
    """LeNet-style ConvNet forward.  x: (N, 3, 32, 32) float32, NCHW."""
    n = x.shape[0]
    assert x.shape[1:] == (C_IN, H_IN, W_IN), x.shape
    cdt = jnp.bfloat16

    # ------------- stage 1: conv1 + ReLU + pool (one Pallas kernel) ---------
    oh1 = H_IN - K + 1           # 28
    ph1 = oh1 // 2               # 14
    cols = jnp.stack([x[:, :, kh:kh + oh1, kw:kw + oh1]
                      for kh in range(K) for kw in range(K)], axis=2)    # (n,3,25,28,28)
    cols = cols.reshape(n, C_IN * K * K, oh1, oh1)                       # idx = c*25+kh*5+kw
    p1 = jnp.stack(
        [cols[:, :, di::2, dj::2].transpose(1, 0, 2, 3)
             .reshape(C_IN * K * K, n * ph1 * ph1)
         for di in (0, 1) for dj in (0, 1)],
        axis=0).astype(cdt)                                              # (4, 75, n*196)

    w1 = params["w1"].reshape(C1, C_IN * K * K).astype(cdt)              # (6, 75)
    b1 = params["b1"].reshape(C1, 1).astype(jnp.float32)

    h1 = pl.pallas_call(
        _conv1_pool_kernel,
        out_shape=jax.ShapeDtypeStruct((C1, n * ph1 * ph1), cdt),
        in_specs=[_vmem_spec() for _ in range(3)],
        out_specs=_vmem_spec(),
    )(p1, w1, b1)                                                        # (6, n*196)

    # ------------- stage 2: conv2 + ReLU + pool + fc1/fc2/fc3 (one kernel) --
    h1 = h1.reshape(C1, n, ph1, ph1)                                     # (C, N, H, W)
    oh2 = ph1 - K + 1            # 10
    ph2 = oh2 // 2               # 5
    cols = jnp.stack([h1[:, :, kh:kh + oh2, kw:kw + oh2]
                      for kh in range(K) for kw in range(K)], axis=1)    # (6,25,n,10,10)
    cols = cols.reshape(C1 * K * K, n, oh2, oh2)                         # idx = c*25+kh*5+kw
    # rows ordered (p = ph2*5 + pw2) major, image minor -> contiguous (n, 16)
    # blocks per spatial position inside the kernel.
    p2 = jnp.stack(
        [cols[:, :, di::2, dj::2].transpose(2, 3, 1, 0)
             .reshape(ph2 * ph2 * n, C1 * K * K)
         for di in (0, 1) for dj in (0, 1)],
        axis=0).astype(cdt)                                              # (4, 25n, 150)

    w2 = params["w2"].reshape(C2, C1 * K * K).T.astype(cdt)              # (150, 16)
    b2 = params["b2"].reshape(1, C2).astype(jnp.float32)
    # fc1 weight: torch input index = c*25 + p  ->  kernel column index = p*16 + c
    wf1 = (params["wf1"].reshape(120, C2, ph2 * ph2)
           .transpose(2, 1, 0).reshape(C2 * ph2 * ph2, 120).astype(cdt))  # (400, 120)
    bf1 = params["bf1"].reshape(1, 120).astype(jnp.float32)
    wf2 = params["wf2"].T.astype(cdt)                                    # (120, 84)
    bf2 = params["bf2"].reshape(1, 84).astype(jnp.float32)
    wf3 = params["wf3"].T.astype(cdt)                                    # (84, 10)
    bf3 = params["bf3"].reshape(1, 10).astype(jnp.float32)

    out = pl.pallas_call(
        functools.partial(_conv2_pool_fc_kernel, n),
        out_shape=jax.ShapeDtypeStruct((n, 10), jnp.float32),
        in_specs=[_vmem_spec() for _ in range(9)],
        out_specs=_vmem_spec(),
        scratch_shapes=[pltpu.VMEM((ph2 * ph2 * n, C2), jnp.float32),
                        pltpu.VMEM((n, C2 * ph2 * ph2), jnp.float32)],
    )(p2, w2, b2, wf1, bf1, wf2, bf2, wf3, bf3)
    return out


# ---------------------------------------------------------------------------
# Pure-JAX f32 reference (PyTorch semantics) for a correctness check
# ---------------------------------------------------------------------------
def _ref_forward(x, p):
    def conv(x, w, b):
        N, C, H, W = x.shape
        OC, IC, k, _ = w.shape
        OH, OW = H - k + 1, W - k + 1
        cols = [x[:, :, kh:kh + OH, kw:kw + OW] for kh in range(k) for kw in range(k)]
        pt = jnp.stack(cols, axis=2).reshape(N, C * k * k, OH, OW)
        pt = pt.transpose(0, 2, 3, 1).reshape(N * OH * OW, C * k * k)
        o = pt @ w.reshape(OC, C * k * k).T + b
        return jnp.maximum(o, 0.0).reshape(N, OH, OW, OC).transpose(0, 3, 1, 2)

    def pool(y):
        N, C, H, W = y.shape
        return jnp.max(y.reshape(N, C, H // 2, 2, W // 2, 2), axis=(3, 5))

    x = pool(conv(x, p["w1"], p["b1"]))
    x = pool(conv(x, p["w2"], p["b2"]))
    x = x.reshape(x.shape[0], 400)
    x = jnp.maximum(x @ p["wf1"].T + p["bf1"], 0.0)
    x = jnp.maximum(x @ p["wf2"].T + p["bf2"], 0.0)
    return x @ p["wf3"].T + p["bf3"]


def init_params(key):
    def uni(k, shape, fan_in):
        bound = 1.0 / jnp.sqrt(jnp.float32(fan_in))
        return jax.random.uniform(k, shape, jnp.float32, -bound, bound)

    ks = jax.random.split(key, 10)
    return {
        "w1": uni(ks[0], (6, 3, 5, 5), 3 * 5 * 5),
        "b1": uni(ks[1], (6,), 3 * 5 * 5),
        "w2": uni(ks[2], (16, 6, 5, 5), 6 * 5 * 5),
        "b2": uni(ks[3], (16,), 6 * 5 * 5),
        "wf1": uni(ks[4], (120, 400), 400),
        "bf1": uni(ks[5], (120,), 400),
        "wf2": uni(ks[6], (84, 120), 120),
        "bf2": uni(ks[7], (84,), 120),
        "wf3": uni(ks[8], (10, 84), 84),
        "bf3": uni(ks[9], (10,), 84),
    }


if __name__ == "__main__":
    key = jax.random.PRNGKey(0)
    pkey, xkey = jax.random.split(key)
    params = init_params(pkey)
    # Module implies 3 input channels and 32x32 spatial (16*5*5 after two conv5+pool2).
    x = jax.random.normal(xkey, (2, 3, 32, 32), jnp.float32)

    fwd = jax.jit(convnet_forward)
    out = jax.block_until_ready(fwd(x, params))
    assert out.shape == (2, 10), out.shape

    ref = _ref_forward(x, params)
    max_err = jnp.max(jnp.abs(out - ref))
    # bf16 MXU inputs with f32 accumulation: expected error is ~1e-3 on these
    # logit magnitudes; 2e-2 gives comfortable margin while still catching
    # layout / indexing regressions.
    assert jnp.allclose(out, ref, atol=2e-2, rtol=2e-2), f"mismatch vs reference (max abs err {max_err})"

    print("KERNEL_OK")
</pallas_src>

<mosaic_0001>
module attributes {stable_mosaic.version = 11 : i64} {
  func.func @_conv1_pool_kernel(%arg0: memref<4x75x392xbf16, #tpu.memory_space<vmem>>, %arg1: memref<6x75xbf16, #tpu.memory_space<vmem>>, %arg2: memref<6x1xf32, #tpu.memory_space<vmem>>, %arg3: memref<6x392xbf16, #tpu.memory_space<vmem>>) attributes {dimension_semantics = [], scalar_prefetch = 0 : i64, scratch_operands = 0 : i64, tpu.core_type = #tpu.core_type<tc>} {
    %c0 = arith.constant 0 : index
    %c0_0 = arith.constant 0 : index
    %0 = vector.load %arg1[%c0, %c0_0] : memref<6x75xbf16, #tpu.memory_space<vmem>>, vector<6x75xbf16>
    %c0_1 = arith.constant 0 : index
    %c0_2 = arith.constant 0 : index
    %c0_3 = arith.constant 0 : index
    %1 = vector.load %arg0[%c0_1, %c0_2, %c0_3] : memref<4x75x392xbf16, #tpu.memory_space<vmem>>, vector<1x75x392xbf16>
    %2 = vector.shape_cast %1 : vector<1x75x392xbf16> to vector<75x392xbf16>
    %cst = arith.constant dense<0.000000e+00> : vector<6x392xf32>
    %3 = tpu.matmul %0, %2, %cst {dimension_numbers = #tpu.dot_dimension_numbers<[1], [0], [0], [1], [0, 0, 1, 1], [], []>} : vector<6x75xbf16>, vector<75x392xbf16>, vector<6x392xf32> -> vector<6x392xf32>
    %c1 = arith.constant 1 : index
    %c0_4 = arith.constant 0 : index
    %c0_5 = arith.constant 0 : index
    %4 = vector.load %arg0[%c1, %c0_4, %c0_5] : memref<4x75x392xbf16, #tpu.memory_space<vmem>>, vector<1x75x392xbf16>
    %5 = vector.shape_cast %4 : vector<1x75x392xbf16> to vector<75x392xbf16>
    %cst_6 = arith.constant dense<0.000000e+00> : vector<6x392xf32>
    %6 = tpu.matmul %0, %5, %cst_6 {dimension_numbers = #tpu.dot_dimension_numbers<[1], [0], [0], [1], [0, 0, 1, 1], [], []>} : vector<6x75xbf16>, vector<75x392xbf16>, vector<6x392xf32> -> vector<6x392xf32>
    %7 = arith.maximumf %3, %6 : vector<6x392xf32>
    %c2 = arith.constant 2 : index
    %c0_7 = arith.constant 0 : index
    %c0_8 = arith.constant 0 : index
    %8 = vector.load %arg0[%c2, %c0_7, %c0_8] : memref<4x75x392xbf16, #tpu.memory_space<vmem>>, vector<1x75x392xbf16>
    %9 = vector.shape_cast %8 : vector<1x75x392xbf16> to vector<75x392xbf16>
    %cst_9 = arith.constant dense<0.000000e+00> : vector<6x392xf32>
    %10 = tpu.matmul %0, %9, %cst_9 {dimension_numbers = #tpu.dot_dimension_numbers<[1], [0], [0], [1], [0, 0, 1, 1], [], []>} : vector<6x75xbf16>, vector<75x392xbf16>, vector<6x392xf32> -> vector<6x392xf32>
    %11 = arith.maximumf %7, %10 : vector<6x392xf32>
    %c3 = arith.constant 3 : index
    %c0_10 = arith.constant 0 : index
    %c0_11 = arith.constant 0 : index
    %12 = vector.load %arg0[%c3, %c0_10, %c0_11] : memref<4x75x392xbf16, #tpu.memory_space<vmem>>, vector<1x75x392xbf16>
    %13 = vector.shape_cast %12 : vector<1x75x392xbf16> to vector<75x392xbf16>
    %cst_12 = arith.constant dense<0.000000e+00> : vector<6x392xf32>
    %14 = tpu.matmul %0, %13, %cst_12 {dimension_numbers = #tpu.dot_dimension_numbers<[1], [0], [0], [1], [0, 0, 1, 1], [], []>} : vector<6x75xbf16>, vector<75x392xbf16>, vector<6x392xf32> -> vector<6x392xf32>
    %15 = arith.maximumf %11, %14 : vector<6x392xf32>
    %c0_13 = arith.constant 0 : index
    %c0_14 = arith.constant 0 : index
    %16 = vector.load %arg2[%c0_13, %c0_14] : memref<6x1xf32, #tpu.memory_space<vmem>>, vector<6x1xf32>
    %17 = vector.broadcast %16 : vector<6x1xf32> to vector<6x392xf32>
    %18 = arith.addf %15, %17 : vector<6x392xf32>
    %cst_15 = arith.constant 0.000000e+00 : f32
    %19 = vector.broadcast %cst_15 : f32 to vector<6x392xf32>
    %20 = arith.maximumf %18, %19 : vector<6x392xf32>
    %21 = arith.truncf %20 : vector<6x392xf32> to vector<6x392xbf16>
    %c0_16 = arith.constant 0 : index
    %c0_17 = arith.constant 0 : index
    %22 = vector.load %arg3[%c0_16, %c0_17] : memref<6x392xbf16, #tpu.memory_space<vmem>>, vector<6x392xbf16>
    tpu.vector_store %arg3[%c0_16, %c0_17], %21 {strides = array<i32>} : memref<6x392xbf16, #tpu.memory_space<vmem>>, vector<6x392xbf16>,
    return
  }
}

module attributes {stable_mosaic.version = 11 : i64} {
  func.func @_conv2_pool_fc_kernel(%arg0: memref<4x50x150xbf16, #tpu.memory_space<vmem>>, %arg1: memref<150x16xbf16, #tpu.memory_space<vmem>>, %arg2: memref<1x16xf32, #tpu.memory_space<vmem>>, %arg3: memref<400x120xbf16, #tpu.memory_space<vmem>>, %arg4: memref<1x120xf32, #tpu.memory_space<vmem>>, %arg5: memref<120x84xbf16, #tpu.memory_space<vmem>>, %arg6: memref<1x84xf32, #tpu.memory_space<vmem>>, %arg7: memref<84x10xbf16, #tpu.memory_space<vmem>>, %arg8: memref<1x10xf32, #tpu.memory_space<vmem>>, %arg9: memref<2x10xf32, #tpu.memory_space<vmem>>, %arg10: memref<50x16xf32, #tpu.memory_space<vmem>>, %arg11: memref<2x400xf32, #tpu.memory_space<vmem>>) attributes {dimension_semantics = [], scalar_prefetch = 0 : i64, scratch_operands = 2 : i64, tpu.core_type = #tpu.core_type<tc>} {
    %c0 = arith.constant 0 : index
    %c0_0 = arith.constant 0 : index
    %0 = vector.load %arg1[%c0, %c0_0] : memref<150x16xbf16, #tpu.memory_space<vmem>>, vector<150x16xbf16>
    %c0_1 = arith.constant 0 : index
    %c0_2 = arith.constant 0 : index
    %c0_3 = arith.constant 0 : index
    %1 = vector.load %arg0[%c0_1, %c0_2, %c0_3] : memref<4x50x150xbf16, #tpu.memory_space<vmem>>, vector<1x50x150xbf16>
    %2 = vector.shape_cast %1 : vector<1x50x150xbf16> to vector<50x150xbf16>
    %cst = arith.constant dense<0.000000e+00> : vector<50x16xf32>
    %3 = tpu.matmul %2, %0, %cst {dimension_numbers = #tpu.dot_dimension_numbers<[1], [0], [0], [1], [0, 0, 1, 1], [], []>} : vector<50x150xbf16>, vector<150x16xbf16>, vector<50x16xf32> -> vector<50x16xf32>
    %c1 = arith.constant 1 : index
    %c0_4 = arith.constant 0 : index
    %c0_5 = arith.constant 0 : index
    %4 = vector.load %arg0[%c1, %c0_4, %c0_5] : memref<4x50x150xbf16, #tpu.memory_space<vmem>>, vector<1x50x150xbf16>
    %5 = vector.shape_cast %4 : vector<1x50x150xbf16> to vector<50x150xbf16>
    %cst_6 = arith.constant dense<0.000000e+00> : vector<50x16xf32>
    %6 = tpu.matmul %5, %0, %cst_6 {dimension_numbers = #tpu.dot_dimension_numbers<[1], [0], [0], [1], [0, 0, 1, 1], [], []>} : vector<50x150xbf16>, vector<150x16xbf16>, vector<50x16xf32> -> vector<50x16xf32>
    %7 = arith.maximumf %3, %6 : vector<50x16xf32>
    %c2 = arith.constant 2 : index
    %c0_7 = arith.constant 0 : index
    %c0_8 = arith.constant 0 : index
    %8 = vector.load %arg0[%c2, %c0_7, %c0_8] : memref<4x50x150xbf16, #tpu.memory_space<vmem>>, vector<1x50x150xbf16>
    %9 = vector.shape_cast %8 : vector<1x50x150xbf16> to vector<50x150xbf16>
    %cst_9 = arith.constant dense<0.000000e+00> : vector<50x16xf32>
    %10 = tpu.matmul %9, %0, %cst_9 {dimension_numbers = #tpu.dot_dimension_numbers<[1], [0], [0], [1], [0, 0, 1, 1], [], []>} : vector<50x150xbf16>, vector<150x16xbf16>, vector<50x16xf32> -> vector<50x16xf32>
    %11 = arith.maximumf %7, %10 : vector<50x16xf32>
    %c3 = arith.constant 3 : index
    %c0_10 = arith.constant 0 : index
    %c0_11 = arith.constant 0 : index
    %12 = vector.load %arg0[%c3, %c0_10, %c0_11] : memref<4x50x150xbf16, #tpu.memory_space<vmem>>, vector<1x50x150xbf16>
    %13 = vector.shape_cast %12 : vector<1x50x150xbf16> to vector<50x150xbf16>
    %cst_12 = arith.constant dense<0.000000e+00> : vector<50x16xf32>
    %14 = tpu.matmul %13, %0, %cst_12 {dimension_numbers = #tpu.dot_dimension_numbers<[1], [0], [0], [1], [0, 0, 1, 1], [], []>} : vector<50x150xbf16>, vector<150x16xbf16>, vector<50x16xf32> -> vector<50x16xf32>
    %15 = arith.maximumf %11, %14 : vector<50x16xf32>
    %c0_13 = arith.constant 0 : index
    %c0_14 = arith.constant 0 : index
    %16 = vector.load %arg2[%c0_13, %c0_14] : memref<1x16xf32, #tpu.memory_space<vmem>>, vector<1x16xf32>
    %17 = vector.broadcast %16 : vector<1x16xf32> to vector<50x16xf32>
    %18 = arith.addf %15, %17 : vector<50x16xf32>
    %cst_15 = arith.constant 0.000000e+00 : f32
    %19 = vector.broadcast %cst_15 : f32 to vector<50x16xf32>
    %20 = arith.maximumf %18, %19 : vector<50x16xf32>
    %c0_16 = arith.constant 0 : index
    %c0_17 = arith.constant 0 : index
    %21 = vector.load %arg10[%c0_16, %c0_17] : memref<50x16xf32, #tpu.memory_space<vmem>>, vector<50x16xf32>
    tpu.vector_store %arg10[%c0_16, %c0_17], %20 {strides = array<i32>} : memref<50x16xf32, #tpu.memory_space<vmem>>, vector<50x16xf32>,
    %c0_18 = arith.constant 0 : index
    %c0_19 = arith.constant 0 : index
    %22 = vector.load %arg10[%c0_18, %c0_19] : memref<50x16xf32, #tpu.memory_space<vmem>>, vector<2x16xf32>
    %c0_20 = arith.constant 0 : index
    %c0_21 = arith.constant 0 : index
    %23 = vector.load %arg11[%c0_20, %c0_21] : memref<2x400xf32, #tpu.memory_space<vmem>>, vector<2x16xf32>
    tpu.vector_store %arg11[%c0_20, %c0_21], %22 {strides = array<i32>} : memref<2x400xf32, #tpu.memory_space<vmem>>, vector<2x16xf32>,
    %c2_22 = arith.constant 2 : index
    %c0_23 = arith.constant 0 : index
    %24 = vector.load %arg10[%c2_22, %c0_23] : memref<50x16xf32, #tpu.memory_space<vmem>>, vector<2x16xf32>
    %c0_24 = arith.constant 0 : index
    %c16 = arith.constant 16 : index
    %25 = vector.load %arg11[%c0_24, %c16] : memref<2x400xf32, #tpu.memory_space<vmem>>, vector<2x16xf32>
    tpu.vector_store %arg11[%c0_24, %c16], %24 {strides = array<i32>} : memref<2x400xf32, #tpu.memory_space<vmem>>, vector<2x16xf32>,
    %c4 = arith.constant 4 : index
    %c0_25 = arith.constant 0 : index
    %26 = vector.load %arg10[%c4, %c0_25] : memref<50x16xf32, #tpu.memory_space<vmem>>, vector<2x16xf32>
    %c0_26 = arith.constant 0 : index
    %c32 = arith.constant 32 : index
    %27 = vector.load %arg11[%c0_26, %c32] : memref<2x400xf32, #tpu.memory_space<vmem>>, vector<2x16xf32>
    tpu.vector_store %arg11[%c0_26, %c32], %26 {strides = array<i32>} : memref<2x400xf32, #tpu.memory_space<vmem>>, vector<2x16xf32>,
    %c6 = arith.constant 6 : index
    %c0_27 = arith.constant 0 : index
    %28 = vector.load %arg10[%c6, %c0_27] : memref<50x16xf32, #tpu.memory_space<vmem>>, vector<2x16xf32>
    %c0_28 = arith.constant 0 : index
    %c48 = arith.constant 48 : index
    %29 = vector.load %arg11[%c0_28, %c48] : memref<2x400xf32, #tpu.memory_space<vmem>>, vector<2x16xf32>
    tpu.vector_store %arg11[%c0_28, %c48], %28 {strides = array<i32>} : memref<2x400xf32, #tpu.memory_space<vmem>>, vector<2x16xf32>,
    %c8 = arith.constant 8 : index
    %c0_29 = arith.constant 0 : index
    %30 = vector.load %arg10[%c8, %c0_29] : memref<50x16xf32, #tpu.memory_space<vmem>>, vector<2x16xf32>
    %c0_30 = arith.constant 0 : index
    %c64 = arith.constant 64 : index
    %31 = vector.load %arg11[%c0_30, %c64] : memref<2x400xf32, #tpu.memory_space<vmem>>, vector<2x16xf32>
    tpu.vector_store %arg11[%c0_30, %c64], %30 {strides = array<i32>} : memref<2x400xf32, #tpu.memory_space<vmem>>, vector<2x16xf32>,
    %c10 = arith.constant 10 : index
    %c0_31 = arith.constant 0 : index
    %32 = vector.load %arg10[%c10, %c0_31] : memref<50x16xf32, #tpu.memory_space<vmem>>, vector<2x16xf32>
    %c0_32 = arith.constant 0 : index
    %c80 = arith.constant 80 : index
    %33 = vector.load %arg11[%c0_32, %c80] : memref<2x400xf32, #tpu.memory_space<vmem>>, vector<2x16xf32>
    tpu.vector_store %arg11[%c0_32, %c80], %32 {strides = array<i32>} : memref<2x400xf32, #tpu.memory_space<vmem>>, vector<2x16xf32>,
    %c12 = arith.constant 12 : index
    %c0_33 = arith.constant 0 : index
    %34 = vector.load %arg10[%c12, %c0_33] : memref<50x16xf32, #tpu.memory_space<vmem>>, vector<2x16xf32>
    %c0_34 = arith.constant 0 : index
    %c96 = arith.constant 96 : index
    %35 = vector.load %arg11[%c0_34, %c96] : memref<2x400xf32, #tpu.memory_space<vmem>>, vector<2x16xf32>
    tpu.vector_store %arg11[%c0_34, %c96], %34 {strides = array<i32>} : memref<2x400xf32, #tpu.memory_space<vmem>>, vector<2x16xf32>,
    %c14 = arith.constant 14 : index
    %c0_35 = arith.constant 0 : index
    %36 = vector.load %arg10[%c14, %c0_35] : memref<50x16xf32, #tpu.memory_space<vmem>>, vector<2x16xf32>
    %c0_36 = arith.constant 0 : index
    %c112 = arith.constant 112 : index
    %37 = vector.load %arg11[%c0_36, %c112] : memref<2x400xf32, #tpu.memory_space<vmem>>, vector<2x16xf32>
    tpu.vector_store %arg11[%c0_36, %c112], %36 {strides = array<i32>} : memref<2x400xf32, #tpu.memory_space<vmem>>, vector<2x16xf32>,
    %c16_37 = arith.constant 16 : index
    %c0_38 = arith.constant 0 : index
    %38 = vector.load %arg10[%c16_37, %c0_38] : memref<50x16xf32, #tpu.memory_space<vmem>>, vector<2x16xf32>
    %c0_39 = arith.constant 0 : index
    %c128 = arith.constant 128 : index
    %39 = vector.load %arg11[%c0_39, %c128] : memref<2x400xf32, #tpu.memory_space<vmem>>, vector<2x16xf32>
    tpu.vector_store %arg11[%c0_39, %c128], %38 {strides = array<i32>} : memref<2x400xf32, #tpu.memory_space<vmem>>, vector<2x16xf32>,
    %c18 = arith.constant 18 : index
    %c0_40 = arith.constant 0 : index
    %40 = vector.load %arg10[%c18, %c0_40] : memref<50x16xf32, #tpu.memory_space<vmem>>, vector<2x16xf32>
    %c0_41 = arith.constant 0 : index
    %c144 = arith.constant 144 : index
    %41 = vector.load %arg11[%c0_41, %c144] : memref<2x400xf32, #tpu.memory_space<vmem>>, vector<2x16xf32>
    tpu.vector_store %arg11[%c0_41, %c144], %40 {strides = array<i32>} : memref<2x400xf32, #tpu.memory_space<vmem>>, vector<2x16xf32>,
    %c20 = arith.constant 20 : index
    %c0_42 = arith.constant 0 : index
    %42 = vector.load %arg10[%c20, %c0_42] : memref<50x16xf32, #tpu.memory_space<vmem>>, vector<2x16xf32>
    %c0_43 = arith.constant 0 : index
    %c160 = arith.constant 160 : index
    %43 = vector.load %arg11[%c0_43, %c160] : memref<2x400xf32, #tpu.memory_space<vmem>>, vector<2x16xf32>
    tpu.vector_store %arg11[%c0_43, %c160], %42 {strides = array<i32>} : memref<2x400xf32, #tpu.memory_space<vmem>>, vector<2x16xf32>,
    %c22 = arith.constant 22 : index
    %c0_44 = arith.constant 0 : index
    %44 = vector.load %arg10[%c22, %c0_44] : memref<50x16xf32, #tpu.memory_space<vmem>>, vector<2x16xf32>
    %c0_45 = arith.constant 0 : index
    %c176 = arith.constant 176 : index
    %45 = vector.load %arg11[%c0_45, %c176] : memref<2x400xf32, #tpu.memory_space<vmem>>, vector<2x16xf32>
    tpu.vector_store %arg11[%c0_45, %c176], %44 {strides = array<i32>} : memref<2x400xf32, #tpu.memory_space<vmem>>, vector<2x16xf32>,
    %c24 = arith.constant 24 : index
    %c0_46 = arith.constant 0 : index
    %46 = vector.load %arg10[%c24, %c0_46] : memref<50x16xf32, #tpu.memory_space<vmem>>, vector<2x16xf32>
    %c0_47 = arith.constant 0 : index
    %c192 = arith.constant 192 : index
    %47 = vector.load %arg11[%c0_47, %c192] : memref<2x400xf32, #tpu.memory_space<vmem>>, vector<2x16xf32>
    tpu.vector_store %arg11[%c0_47, %c192], %46 {strides = array<i32>} : memref<2x400xf32, #tpu.memory_space<vmem>>, vector<2x16xf32>,
    %c26 = arith.constant 26 : index
    %c0_48 = arith.constant 0 : index
    %48 = vector.load %arg10[%c26, %c0_48] : memref<50x16xf32, #tpu.memory_space<vmem>>, vector<2x16xf32>
    %c0_49 = arith.constant 0 : index
    %c208 = arith.constant 208 : index
    %49 = vector.load %arg11[%c0_49, %c208] : memref<2x400xf32, #tpu.memory_space<vmem>>, vector<2x16xf32>
    tpu.vector_store %arg11[%c0_49, %c208], %48 {strides = array<i32>} : memref<2x400xf32, #tpu.memory_space<vmem>>, vector<2x16xf32>,
    %c28 = arith.constant 28 : index
    %c0_50 = arith.constant 0 : index
    %50 = vector.load %arg10[%c28, %c0_50] : memref<50x16xf32, #tpu.memory_space<vmem>>, vector<2x16xf32>
    %c0_51 = arith.constant 0 : index
    %c224 = arith.constant 224 : index
    %51 = vector.load %arg11[%c0_51, %c224] : memref<2x400xf32, #tpu.memory_space<vmem>>, vector<2x16xf32>
    tpu.vector_store %arg11[%c0_51, %c224], %50 {strides = array<i32>} : memref<2x400xf32, #tpu.memory_space<vmem>>, vector<2x16xf32>,
    %c30 = arith.constant 30 : index
    %c0_52 = arith.constant 0 : index
    %52 = vector.load %arg10[%c30, %c0_52] : memref<50x16xf32, #tpu.memory_space<vmem>>, vector<2x16xf32>
    %c0_53 = arith.constant 0 : index
    %c240 = arith.constant 240 : index
    %53 = vector.load %arg11[%c0_53, %c240] : memref<2x400xf32, #tpu.memory_space<vmem>>, vector<2x16xf32>
    tpu.vector_store %arg11[%c0_53, %c240], %52 {strides = array<i32>} : memref<2x400xf32, #tpu.memory_space<vmem>>, vector<2x16xf32>,
    %c32_54 = arith.constant 32 : index
    %c0_55 = arith.constant 0 : index
    %54 = vector.load %arg10[%c32_54, %c0_55] : memref<50x16xf32, #tpu.memory_space<vmem>>, vector<2x16xf32>
    %c0_56 = arith.constant 0 : index
    %c256 = arith.constant 256 : index
    %55 = vector.load %arg11[%c0_56, %c256] : memref<2x400xf32, #tpu.memory_space<vmem>>, vector<2x16xf32>
    tpu.vector_store %arg11[%c0_56, %c256], %54 {strides = array<i32>} : memref<2x400xf32, #tpu.memory_space<vmem>>, vector<2x16xf32>,
    %c34 = arith.constant 34 : index
    %c0_57 = arith.constant 0 : index
    %56 = vector.load %arg10[%c34, %c0_57] : memref<50x16xf32, #tpu.memory_space<vmem>>, vector<2x16xf32>
    %c0_58 = arith.constant 0 : index
    %c272 = arith.constant 272 : index
    %57 = vector.load %arg11[%c0_58, %c272] : memref<2x400xf32, #tpu.memory_space<vmem>>, vector<2x16xf32>
    tpu.vector_store %arg11[%c0_58, %c272], %56 {strides = array<i32>} : memref<2x400xf32, #tpu.memory_space<vmem>>, vector<2x16xf32>,
    %c36 = arith.constant 36 : index
    %c0_59 = arith.constant 0 : index
    %58 = vector.load %arg10[%c36, %c0_59] : memref<50x16xf32, #tpu.memory_space<vmem>>, vector<2x16xf32>
    %c0_60 = arith.constant 0 : index
    %c288 = arith.constant 288 : index
    %59 = vector.load %arg11[%c0_60, %c288] : memref<2x400xf32, #tpu.memory_space<vmem>>, vector<2x16xf32>
    tpu.vector_store %arg11[%c0_60, %c288], %58 {strides = array<i32>} : memref<2x400xf32, #tpu.memory_space<vmem>>, vector<2x16xf32>,
    %c38 = arith.constant 38 : index
    %c0_61 = arith.constant 0 : index
    %60 = vector.load %arg10[%c38, %c0_61] : memref<50x16xf32, #tpu.memory_space<vmem>>, vector<2x16xf32>
    %c0_62 = arith.constant 0 : index
    %c304 = arith.constant 304 : index
    %61 = vector.load %arg11[%c0_62, %c304] : memref<2x400xf32, #tpu.memory_space<vmem>>, vector<2x16xf32>
    tpu.vector_store %arg11[%c0_62, %c304], %60 {strides = array<i32>} : memref<2x400xf32, #tpu.memory_space<vmem>>, vector<2x16xf32>,
    %c40 = arith.constant 40 : index
    %c0_63 = arith.constant 0 : index
    %62 = vector.load %arg10[%c40, %c0_63] : memref<50x16xf32, #tpu.memory_space<vmem>>, vector<2x16xf32>
    %c0_64 = arith.constant 0 : index
    %c320 = arith.constant 320 : index
    %63 = vector.load %arg11[%c0_64, %c320] : memref<2x400xf32, #tpu.memory_space<vmem>>, vector<2x16xf32>
    tpu.vector_store %arg11[%c0_64, %c320], %62 {strides = array<i32>} : memref<2x400xf32, #tpu.memory_space<vmem>>, vector<2x16xf32>,
    %c42 = arith.constant 42 : index
    %c0_65 = arith.constant 0 : index
    %64 = vector.load %arg10[%c42, %c0_65] : memref<50x16xf32, #tpu.memory_space<vmem>>, vector<2x16xf32>
    %c0_66 = arith.constant 0 : index
    %c336 = arith.constant 336 : index
    %65 = vector.load %arg11[%c0_66, %c336] : memref<2x400xf32, #tpu.memory_space<vmem>>, vector<2x16xf32>
    tpu.vector_store %arg11[%c0_66, %c336], %64 {strides = array<i32>} : memref<2x400xf32, #tpu.memory_space<vmem>>, vector<2x16xf32>,
    %c44 = arith.constant 44 : index
    %c0_67 = arith.constant 0 : index
    %66 = vector.load %arg10[%c44, %c0_67] : memref<50x16xf32, #tpu.memory_space<vmem>>, vector<2x16xf32>
    %c0_68 = arith.constant 0 : index
    %c352 = arith.constant 352 : index
    %67 = vector.load %arg11[%c0_68, %c352] : memref<2x400xf32, #tpu.memory_space<vmem>>, vector<2x16xf32>
    tpu.vector_store %arg11[%c0_68, %c352], %66 {strides = array<i32>} : memref<2x400xf32, #tpu.memory_space<vmem>>, vector<2x16xf32>,
    %c46 = arith.constant 46 : index
    %c0_69 = arith.constant 0 : index
    %68 = vector.load %arg10[%c46, %c0_69] : memref<50x16xf32, #tpu.memory_space<vmem>>, vector<2x16xf32>
    %c0_70 = arith.constant 0 : index
    %c368 = arith.constant 368 : index
    %69 = vector.load %arg11[%c0_70, %c368] : memref<2x400xf32, #tpu.memory_space<vmem>>, vector<2x16xf32>
    tpu.vector_store %arg11[%c0_70, %c368], %68 {strides = array<i32>} : memref<2x400xf32, #tpu.memory_space<vmem>>, vector<2x16xf32>,
    %c48_71 = arith.constant 48 : index
    %c0_72 = arith.constant 0 : index
    %70 = vector.load %arg10[%c48_71, %c0_72] : memref<50x16xf32, #tpu.memory_space<vmem>>, vector<2x16xf32>
    %c0_73 = arith.constant 0 : index
    %c384 = arith.constant 384 : index
    %71 = vector.load %arg11[%c0_73, %c384] : memref<2x400xf32, #tpu.memory_space<vmem>>, vector<2x16xf32>
    tpu.vector_store %arg11[%c0_73, %c384], %70 {strides = array<i32>} : memref<2x400xf32, #tpu.memory_space<vmem>>, vector<2x16xf32>,
    %c0_74 = arith.constant 0 : index
    %c0_75 = arith.constant 0 : index
    %72 = vector.load %arg11[%c0_74, %c0_75] : memref<2x400xf32, #tpu.memory_space<vmem>>, vector<2x400xf32>
    %73 = arith.truncf %72 : vector<2x400xf32> to vector<2x400xbf16>
    %c0_76 = arith.constant 0 : index
    %c0_77 = arith.constant 0 : index
    %74 = vector.load %arg3[%c0_76, %c0_77] : memref<400x120xbf16, #tpu.memory_space<vmem>>, vector<400x120xbf16>
    %cst_78 = arith.constant dense<0.000000e+00> : vector<2x120xf32>
    %75 = tpu.matmul %73, %74, %cst_78 {dimension_numbers = #tpu.dot_dimension_numbers<[1], [0], [0], [1], [0, 0, 1, 1], [], []>} : vector<2x400xbf16>, vector<400x120xbf16>, vector<2x120xf32> -> vector<2x120xf32>
    %c0_79 = arith.constant 0 : index
    %c0_80 = arith.constant 0 : index
    %76 = vector.load %arg4[%c0_79, %c0_80] : memref<1x120xf32, #tpu.memory_space<vmem>>, vector<1x120xf32>
    %77 = vector.broadcast %76 : vector<1x120xf32> to vector<2x120xf32>
    %78 = arith.addf %75, %77 : vector<2x120xf32>
    %cst_81 = arith.constant 0.000000e+00 : f32
    %79 = vector.broadcast %cst_81 : f32 to vector<2x120xf32>
    %80 = arith.maximumf %78, %79 : vector<2x120xf32>
    %81 = arith.truncf %80 : vector<2x120xf32> to vector<2x120xbf16>
    %c0_82 = arith.constant 0 : index
    %c0_83 = arith.constant 0 : index
    %82 = vector.load %arg5[%c0_82, %c0_83] : memref<120x84xbf16, #tpu.memory_space<vmem>>, vector<120x84xbf16>
    %cst_84 = arith.constant dense<0.000000e+00> : vector<2x84xf32>
    %83 = tpu.matmul %81, %82, %cst_84 {dimension_numbers = #tpu.dot_dimension_numbers<[1], [0], [0], [1], [0, 0, 1, 1], [], []>} : vector<2x120xbf16>, vector<120x84xbf16>, vector<2x84xf32> -> vector<2x84xf32>
    %c0_85 = arith.constant 0 : index
    %c0_86 = arith.constant 0 : index
    %84 = vector.load %arg6[%c0_85, %c0_86] : memref<1x84xf32, #tpu.memory_space<vmem>>, vector<1x84xf32>
    %85 = vector.broadcast %84 : vector<1x84xf32> to vector<2x84xf32>
    %86 = arith.addf %83, %85 : vector<2x84xf32>
    %cst_87 = arith.constant 0.000000e+00 : f32
    %87 = vector.broadcast %cst_87 : f32 to vector<2x84xf32>
    %88 = arith.maximumf %86, %87 : vector<2x84xf32>
    %89 = arith.truncf %88 : vector<2x84xf32> to vector<2x84xbf16>
    %c0_88 = arith.constant 0 : index
    %c0_89 = arith.constant 0 : index
    %90 = vector.load %arg7[%c0_88, %c0_89] : memref<84x10xbf16, #tpu.memory_space<vmem>>, vector<84x10xbf16>
    %cst_90 = arith.constant dense<0.000000e+00> : vector<2x10xf32>
    %91 = tpu.matmul %89, %90, %cst_90 {dimension_numbers = #tpu.dot_dimension_numbers<[1], [0], [0], [1], [0, 0, 1, 1], [], []>} : vector<2x84xbf16>, vector<84x10xbf16>, vector<2x10xf32> -> vector<2x10xf32>
    %c0_91 = arith.constant 0 : index
    %c0_92 = arith.constant 0 : index
    %92 = vector.load %arg8[%c0_91, %c0_92] : memref<1x10xf32, #tpu.memory_space<vmem>>, vector<1x10xf32>
    %93 = vector.broadcast %92 : vector<1x10xf32> to vector<2x10xf32>
    %94 = arith.addf %91, %93 : vector<2x10xf32>
    %c0_93 = arith.constant 0 : index
    %c0_94 = arith.constant 0 : index
    %95 = vector.load %arg9[%c0_93, %c0_94] : memref<2x10xf32, #tpu.memory_space<vmem>>, vector<2x10xf32>
    tpu.vector_store %arg9[%c0_93, %c0_94], %94 {strides = array<i32>} : memref<2x10xf32, #tpu.memory_space<vmem>>, vector<2x10xf32>,
    return
  }
}

</mosaic_0001>

<llo_original>
// kernel: convnet_forward.2
$region0: #{convnet_forward.2}
  #allocation0 [shape = 'u32[]', space=smem, size = 0x4, offset = 0x4, fixed_abs, tag = 'smem constant byte address 0x4 - core index']
  #allocation1 [shape = 'u32[144,128]{1,0:T(1,128)}', space=vmem, size = 0x12000, scoped, tag = 'internal scratch']
  %s0 = inlined_call_operand.vmem [shape: bf16[4,75,392], index: 0, kind: input, shape index: {}]
  %s1 = inlined_call_operand.vmem [shape: bf16[6,75], index: 1, kind: input, shape index: {}]
  %s2 = inlined_call_operand.vmem [shape: f32[6,1], index: 2, kind: input, shape index: {}]
  %s3 = inlined_call_operand.vmem [shape: bf16[6,392], index: 3, kind: output, shape index: {}]
  %s4 = sld [smem:[#allocation0]]
  $region22: #{convnet_forward.2} parent=0
    _
  %s6 = ssub.s32 1, %s4
  %s7 = scalar_select 0, %s6, %s4
  // Predicated region
  $region2: #{convnet_forward.2} parent=0 // pred_check
    _
  $region3: #{convnet_forward.2} parent=0 // pred_check_branch
    %9 = sbr.rel (0) target = $region5
  $region4: #{convnet_forward.2} parent=0 // pred_region
    _
  $region5: #{convnet_forward.2} parent=0 // pred_fallthru
    _
  // Predicated region
  $region6: #{convnet_forward.2} parent=0 // pred_check
    _
  $region7: #{convnet_forward.2} parent=0 // pred_check_branch
    %11 = sbr.rel (0) target = $region9
  $region8: #{convnet_forward.2} parent=0 // pred_region
    _
  $region9: #{convnet_forward.2} parent=0 // pred_fallthru
    _
  // Predicated region
  $region10: #{convnet_forward.2} parent=0 // pred_check
    _
  $region11: #{convnet_forward.2} parent=0 // pred_check_branch
    %13 = sbr.rel (0) target = $region13
  $region12: #{convnet_forward.2} parent=0 // pred_region
    _
  $region13: #{convnet_forward.2} parent=0 // pred_fallthru
    _
  %v15 = vld [vmem:[%s1] sm:$0x7]
  %v16 = vld [vmem:[%s0] sm:$0xff]
  %v17 = vld [vmem:[%s0 + $0x8] sm:$0xff]
  %v18 = vld [vmem:[%s0 + $0x10] sm:$0xff]
  %v19 = vld [vmem:[%s0 + $0x18] sm:$0xff]
  %v20 = vld [vmem:[%s0 + $0x20] sm:$0xff]
  %v21 = vld [vmem:[%s0 + $0x28] sm:$0xff]
  %v22 = vld [vmem:[%s0 + $0x30] sm:$0xff]
  %v23 = vld [vmem:[%s0 + $0x38] sm:$0xff]
  %v24 = vld [vmem:[%s0 + $0x40] sm:$0xff]
  %v25 = vld [vmem:[%s0 + $0x48] sm:$0xff]
  %v26 = vld [vmem:[%s0 + $0x50] sm:$0xff]
  %v27 = vld [vmem:[%s0 + $0x58] sm:$0xff]
  %v28 = vld [vmem:[%s0 + $0x60] sm:$0xff]
  %v29 = vld [vmem:[%s0 + $0x68] sm:$0xff]
  %v30 = vld [vmem:[%s0 + $0x70] sm:$0xff]
  %v31 = vld [vmem:[%s0 + $0x78] sm:$0xff]
  %v32 = vld [vmem:[%s0 + $0x80] sm:$0xff]
  %v33 = vld [vmem:[%s0 + $0x88] sm:$0xff]
  %v34 = vld [vmem:[%s0 + $0x90] sm:$0x33]
  %v35 = vld [vmem:[%s0 + $0x98] sm:$0x33]
  %v56 = vunpack.c.l.b16 %v16
  %v57 = vunpack.c.h.b16 %v16
  %v58 = vunpack.c.l.b16 %v17
  %v59 = vunpack.c.h.b16 %v17
  %v60 = vunpack.c.l.b16 %v18
  %v61 = vunpack.c.h.b16 %v18
  %v62 = vunpack.c.l.b16 %v19
  %v63 = vunpack.c.h.b16 %v19
  %v64 = vunpack.c.l.b16 %v20
  %v65 = vunpack.c.h.b16 %v20
  %v66 = vunpack.c.l.b16 %v21
  %v67 = vunpack.c.h.b16 %v21
  %v68 = vunpack.c.l.b16 %v22
  %v69 = vunpack.c.h.b16 %v22
  %v70 = vunpack.c.l.b16 %v23
  %v71 = vunpack.c.h.b16 %v23
  %v72 = vunpack.c.l.b16 %v24
  %v73 = vunpack.c.h.b16 %v24
  %v74 = vunpack.c.l.b16 %v25
  %v75 = vunpack.c.h.b16 %v25
  %v76 = vunpack.c.l.b16 %v26
  %v77 = vunpack.c.h.b16 %v26
  %v78 = vunpack.c.l.b16 %v27
  %v79 = vunpack.c.h.b16 %v27
  %v80 = vunpack.c.l.b16 %v28
  %v81 = vunpack.c.h.b16 %v28
  %v82 = vunpack.c.l.b16 %v29
  %v83 = vunpack.c.h.b16 %v29
  %v84 = vunpack.c.l.b16 %v30
  %v85 = vunpack.c.h.b16 %v30
  %v86 = vunpack.c.l.b16 %v31
  %v87 = vunpack.c.h.b16 %v31
  %v88 = vunpack.c.l.b16 %v32
  %v89 = vunpack.c.h.b16 %v32
  %v90 = vunpack.c.l.b16 %v33
  %v91 = vunpack.c.h.b16 %v33
  %v92 = vunpack.c.l.b16 %v34
  %v93 = vunpack.c.h.b16 %v34
  %v94 = vunpack.c.l.b16 %v35
  %v95 = vunpack.c.h.b16 %v35
  %v96 = vpack.c.b16 %v60, %v56
  %v97 = vpack.c.b16 %v61, %v57
  %v98 = vpack.c.b16 %v62, %v58
  %v99 = vpack.c.b16 %v63, %v59
  %v100 = vpack.c.b16 %v68, %v64
  %v101 = vpack.c.b16 %v69, %v65
  %v102 = vpack.c.b16 %v70, %v66
  %v103 = vpack.c.b16 %v71, %v67
  %v104 = vpack.c.b16 %v76, %v72
  %v105 = vpack.c.b16 %v77, %v73
  %v106 = vpack.c.b16 %v78, %v74
  %v107 = vpack.c.b16 %v79, %v75
  %v108 = vpack.c.b16 %v84, %v80
  %v109 = vpack.c.b16 %v85, %v81
  %v110 = vpack.c.b16 %v86, %v82
  %v111 = vpack.c.b16 %v87, %v83
  %v112 = vpack.c.b16 %v92, %v88
  %v113 = vpack.c.b16 %v93, %v89
  %v114 = vpack.c.b16 %v94, %v90
  %v115 = vpack.c.b16 %v95, %v91
  %vm132 = vcmask 613376
  %v134 = vsel %vm132, %v15, 0
  %vm136 = vcmask 1044480
  %vm137 = vcmask 1045504
  %v138 = vsel %vm136, 4294967295, 65535
  %v139 = vsel %vm137, %v138, 0
  %v141 = vand.u32 %v112, %v139
  %v144 = vand.u32 %v113, %v139
  %v147 = vand.u32 %v114, %v139
  %v150 = vand.u32 %v115, %v139
  %152 = vmatprep.subr.bf16.mxu0 %v97
  %153 = vmatpush1.bf16.msra.mxu0 %v96
  %154 = vmatprep.subr.bf16.mxu0 %v101
  %155 = vmatpush1.bf16.msra.mxu0 %v100
  %156 = vmatprep.subr.bf16.mxu0 %v105
  %157 = vmatpush1.bf16.msra.mxu0 %v104
  %158 = vmatprep.subr.bf16.mxu0 %v109
  %159 = vmatpush1.bf16.msra.mxu0 %v108
  %160 = vmatprep.subr.bf16.mxu0 %v144
  %161 = vmatpush1.bf16.msra.mxu0 %v141
  %162 = vmatprep.subr.bf16.mxu0 0
  %163 = vmatpush1.bf16.msra.mxu0 0
  %164 = vmatprep.subr.bf16.mxu0 0
  %165 = vmatpush1.bf16.msra.mxu0 0
  %166 = vmatprep.subr.bf16.mxu0 0
  %167 = vmatpush1.bf16.msra.mxu0 0
  %168 = vmatprep.subr.bf16.mxu0 0
  %169 = vmatpush1.bf16.msra.mxu0 0
  %170 = vmatprep.subr.bf16.mxu0 0
  %171 = vmatpush1.bf16.msra.mxu0 0
  %172 = vmatprep.subr.bf16.mxu0 0
  %173 = vmatpush1.bf16.msra.mxu0 0
  %174 = vmatprep.subr.bf16.mxu0 0
  %175 = vmatpush1.bf16.msra.mxu0 0
  %176 = vmatprep.subr.bf16.mxu0 0
  %177 = vmatpush1.bf16.msra.mxu0 0
  %178 = vmatprep.subr.bf16.mxu0 0
  %179 = vmatpush1.bf16.msra.mxu0 0
  %180 = vmatprep.subr.bf16.mxu0 0
  %181 = vmatpush1.bf16.msra.mxu0 0
  %182 = vmatprep.subr.bf16.mxu0 0
  %183 = vmatpush1.bf16.msra.mxu0 0
  %184 = vmatprep.mubr.bf16.mxu0 0
  %185 = vmatmul.mubr.bf16.gmra.mrb[0].mxu0 %v134
  %v186 = vpop.f32.mrb[0].mxu0
  %v187 = vadd.f32 0.0, %v186
  %v188 = vpop.f32.mrb[0].mxu0
  %v189 = vadd.f32 0.0, %v188
  %v190 = vpop.f32.mrb[0].mxu0
  %v191 = vpop.f32.mrb[0].mxu0
  %192 = vdwg.mxu0
  %193 = vmatprep.subr.bf16.mxu0 %v99
  %194 = vmatpush1.bf16.msra.mxu0 %v98
  %195 = vmatprep.subr.bf16.mxu0 %v103
  %196 = vmatpush1.bf16.msra.mxu0 %v102
  %197 = vmatprep.subr.bf16.mxu0 %v107
  %198 = vmatpush1.bf16.msra.mxu0 %v106
  %199 = vmatprep.subr.bf16.mxu0 %v111
  %200 = vmatpush1.bf16.msra.mxu0 %v110
  %201 = vmatprep.subr.bf16.mxu0 %v150
  %202 = vmatpush1.bf16.msra.mxu0 %v147
  %203 = vmatprep.subr.bf16.mxu0 0
  %204 = vmatpush1.bf16.msra.mxu0 0
  %205 = vmatprep.subr.bf16.mxu0 0
  %206 = vmatpush1.bf16.msra.mxu0 0
  %207 = vmatprep.subr.bf16.mxu0 0
  %208 = vmatpush1.bf16.msra.mxu0 0
  %209 = vmatprep.subr.bf16.mxu0 0
  %210 = vmatpush1.bf16.msra.mxu0 0
  %211 = vmatprep.subr.bf16.mxu0 0
  %212 = vmatpush1.bf16.msra.mxu0 0
  %213 = vmatprep.subr.bf16.mxu0 0
  %214 = vmatpush1.bf16.msra.mxu0 0
  %215 = vmatprep.subr.bf16.mxu0 0
  %216 = vmatpush1.bf16.msra.mxu0 0
  %217 = vmatprep.subr.bf16.mxu0 0
  %218 = vmatpush1.bf16.msra.mxu0 0
  %219 = vmatprep.subr.bf16.mxu0 0
  %220 = vmatpush1.bf16.msra.mxu0 0
  %221 = vmatprep.subr.bf16.mxu0 0
  %222 = vmatpush1.bf16.msra.mxu0 0
  %223 = vmatprep.subr.bf16.mxu0 0
  %224 = vmatpush1.bf16.msra.mxu0 0
  %225 = vmatprep.mubr.bf16.mxu0 0
  %226 = vmatmul.mubr.bf16.gmra.mrb[0].mxu0 %v134
  %v227 = vpop.f32.mrb[0].mxu0
  %v228 = vadd.f32 0.0, %v227
  %v229 = vpop.f32.mrb[0].mxu0
  %v230 = vadd.f32 0.0, %v229
  %v231 = vpop.f32.mrb[0].mxu0
  %v232 = vpop.f32.mrb[0].mxu0
  %233 = vdwg.mxu0
  %s234 = scalar_lea.vmem %s0, 160
  %v235 = vld [vmem:[%s234] sm:$0xff]
  %v236 = vld [vmem:[%s234 + $0x8] sm:$0xff]
  %v237 = vld [vmem:[%s234 + $0x10] sm:$0xff]
  %v238 = vld [vmem:[%s234 + $0x18] sm:$0xff]
  %v239 = vld [vmem:[%s234 + $0x20] sm:$0xff]
  %v240 = vld [vmem:[%s234 + $0x28] sm:$0xff]
  %v241 = vld [vmem:[%s234 + $0x30] sm:$0xff]
  %v242 = vld [vmem:[%s234 + $0x38] sm:$0xff]
  %v243 = vld [vmem:[%s234 + $0x40] sm:$0xff]
  %v244 = vld [vmem:[%s234 + $0x48] sm:$0xff]
  %v245 = vld [vmem:[%s234 + $0x50] sm:$0xff]
  %v246 = vld [vmem:[%s234 + $0x58] sm:$0xff]
  %v247 = vld [vmem:[%s234 + $0x60] sm:$0xff]
  %v248 = vld [vmem:[%s234 + $0x68] sm:$0xff]
  %v249 = vld [vmem:[%s234 + $0x70] sm:$0xff]
  %v250 = vld [vmem:[%s234 + $0x78] sm:$0xff]
  %v251 = vld [vmem:[%s234 + $0x80] sm:$0xff]
  %v252 = vld [vmem:[%s234 + $0x88] sm:$0xff]
  %v253 = vld [vmem:[%s234 + $0x90] sm:$0x33]
  %v254 = vld [vmem:[%s234 + $0x98] sm:$0x33]
  %v275 = vunpack.c.l.b16 %v235
  %v276 = vunpack.c.h.b16 %v235
  %v277 = vunpack.c.l.b16 %v236
  %v278 = vunpack.c.h.b16 %v236
  %v279 = vunpack.c.l.b16 %v237
  %v280 = vunpack.c.h.b16 %v237
  %v281 = vunpack.c.l.b16 %v238
  %v282 = vunpack.c.h.b16 %v238
  %v283 = vunpack.c.l.b16 %v239
  %v284 = vunpack.c.h.b16 %v239
  %v285 = vunpack.c.l.b16 %v240
  %v286 = vunpack.c.h.b16 %v240
  %v287 = vunpack.c.l.b16 %v241
  %v288 = vunpack.c.h.b16 %v241
  %v289 = vunpack.c.l.b16 %v242
  %v290 = vunpack.c.h.b16 %v242
  %v291 = vunpack.c.l.b16 %v243
  %v292 = vunpack.c.h.b16 %v243
  %v293 = vunpack.c.l.b16 %v244
  %v294 = vunpack.c.h.b16 %v244
  %v295 = vunpack.c.l.b16 %v245
  %v296 = vunpack.c.h.b16 %v245
  %v297 = vunpack.c.l.b16 %v246
  %v298 = vunpack.c.h.b16 %v246
  %v299 = vunpack.c.l.b16 %v247
  %v300 = vunpack.c.h.b16 %v247
  %v301 = vunpack.c.l.b16 %v248
  %v302 = vunpack.c.h.b16 %v248
  %v303 = vunpack.c.l.b16 %v249
  %v304 = vunpack.c.h.b16 %v249
  %v305 = vunpack.c.l.b16 %v250
  %v306 = vunpack.c.h.b16 %v250
  %v307 = vunpack.c.l.b16 %v251
  %v308 = vunpack.c.h.b16 %v251
  %v309 = vunpack.c.l.b16 %v252
  %v310 = vunpack.c.h.b16 %v252
  %v311 = vunpack.c.l.b16 %v253
  %v312 = vunpack.c.h.b16 %v253
  %v313 = vunpack.c.l.b16 %v254
  %v314 = vunpack.c.h.b16 %v254
  %v315 = vpack.c.b16 %v279, %v275
  %v316 = vpack.c.b16 %v280, %v276
  %v317 = vpack.c.b16 %v281, %v277
  %v318 = vpack.c.b16 %v282, %v278
  %v319 = vpack.c.b16 %v287, %v283
  %v320 = vpack.c.b16 %v288, %v284
  %v321 = vpack.c.b16 %v289, %v285
  %v322 = vpack.c.b16 %v290, %v286
  %v323 = vpack.c.b16 %v295, %v291
  %v324 = vpack.c.b16 %v296, %v292
  %v325 = vpack.c.b16 %v297, %v293
  %v326 = vpack.c.b16 %v298, %v294
  %v327 = vpack.c.b16 %v303, %v299
  %v328 = vpack.c.b16 %v304, %v300
  %v329 = vpack.c.b16 %v305, %v301
  %v330 = vpack.c.b16 %v306, %v302
  %v331 = vpack.c.b16 %v311, %v307
  %v332 = vpack.c.b16 %v312, %v308
  %v333 = vpack.c.b16 %v313, %v309
  %v334 = vpack.c.b16 %v314, %v310
  %v352 = vand.u32 %v331, %v139
  %v355 = vand.u32 %v332, %v139
  %v358 = vand.u32 %v333, %v139
  %v361 = vand.u32 %v334, %v139
  %363 = vmatprep.subr.bf16.mxu0 %v316
  %364 = vmatpush1.bf16.msra.mxu0 %v315
  %365 = vmatprep.subr.bf16.mxu0 %v320
  %366 = vmatpush1.bf16.msra.mxu0 %v319
  %367 = vmatprep.subr.bf16.mxu0 %v324
  %368 = vmatpush1.bf16.msra.mxu0 %v323
  %369 = vmatprep.subr.bf16.mxu0 %v328
  %370 = vmatpush1.bf16.msra.mxu0 %v327
  %371 = vmatprep.subr.bf16.mxu0 %v355
  %372 = vmatpush1.bf16.msra.mxu0 %v352
  %373 = vmatprep.subr.bf16.mxu0 0
  %374 = vmatpush1.bf16.msra.mxu0 0
  %375 = vmatprep.subr.bf16.mxu0 0
  %376 = vmatpush1.bf16.msra.mxu0 0
  %377 = vmatprep.subr.bf16.mxu0 0
  %378 = vmatpush1.bf16.msra.mxu0 0
  %379 = vmatprep.subr.bf16.mxu0 0
  %380 = vmatpush1.bf16.msra.mxu0 0
  %381 = vmatprep.subr.bf16.mxu0 0
  %382 = vmatpush1.bf16.msra.mxu0 0
  %383 = vmatprep.subr.bf16.mxu0 0
  %384 = vmatpush1.bf16.msra.mxu0 0
  %385 = vmatprep.subr.bf16.mxu0 0
  %386 = vmatpush1.bf16.msra.mxu0 0
  %387 = vmatprep.subr.bf16.mxu0 0
  %388 = vmatpush1.bf16.msra.mxu0 0
  %389 = vmatprep.subr.bf16.mxu0 0
  %390 = vmatpush1.bf16.msra.mxu0 0
  %391 = vmatprep.subr.bf16.mxu0 0
  %392 = vmatpush1.bf16.msra.mxu0 0
  %393 = vmatprep.subr.bf16.mxu0 0
  %394 = vmatpush1.bf16.msra.mxu0 0
  %395 = vmatprep.mubr.bf16.mxu0 0
  %396 = vmatmul.mubr.bf16.gmra.mrb[0].mxu0 %v134
  %v397 = vpop.f32.mrb[0].mxu0
  %v398 = vadd.f32 0.0, %v397
  %v399 = vpop.f32.mrb[0].mxu0
  %v400 = vadd.f32 0.0, %v399
  %v401 = vpop.f32.mrb[0].mxu0
  %v402 = vpop.f32.mrb[0].mxu0
  %403 = vdwg.mxu0
  %404 = vmatprep.subr.bf16.mxu0 %v318
  %405 = vmatpush1.bf16.msra.mxu0 %v317
  %406 = vmatprep.subr.bf16.mxu0 %v322
  %407 = vmatpush1.bf16.msra.mxu0 %v321
  %408 = vmatprep.subr.bf16.mxu0 %v326
  %409 = vmatpush1.bf16.msra.mxu0 %v325
  %410 = vmatprep.subr.bf16.mxu0 %v330
  %411 = vmatpush1.bf16.msra.mxu0 %v329
  %412 = vmatprep.subr.bf16.mxu0 %v361
  %413 = vmatpush1.bf16.msra.mxu0 %v358
  %414 = vmatprep.subr.bf16.mxu0 0
  %415 = vmatpush1.bf16.msra.mxu0 0
  %416 = vmatprep.subr.bf16.mxu0 0
  %417 = vmatpush1.bf16.msra.mxu0 0
  %418 = vmatprep.subr.bf16.mxu0 0
  %419 = vmatpush1.bf16.msra.mxu0 0
  %420 = vmatprep.subr.bf16.mxu0 0
  %421 = vmatpush1.bf16.msra.mxu0 0
  %422 = vmatprep.subr.bf16.mxu0 0
  %423 = vmatpush1.bf16.msra.mxu0 0
  %424 = vmatprep.subr.bf16.mxu0 0
  %425 = vmatpush1.bf16.msra.mxu0 0
  %426 = vmatprep.subr.bf16.mxu0 0
  %427 = vmatpush1.bf16.msra.mxu0 0
  %428 = vmatprep.subr.bf16.mxu0 0
  %429 = vmatpush1.bf16.msra.mxu0 0
  %430 = vmatprep.subr.bf16.mxu0 0
  %431 = vmatpush1.bf16.msra.mxu0 0
  %432 = vmatprep.subr.bf16.mxu0 0
  %433 = vmatpush1.bf16.msra.mxu0 0
  %434 = vmatprep.subr.bf16.mxu0 0
  %435 = vmatpush1.bf16.msra.mxu0 0
  %436 = vmatprep.mubr.bf16.mxu0 0
  %437 = vmatmul.mubr.bf16.gmra.mrb[0].mxu0 %v134
  %v438 = vpop.f32.mrb[0].mxu0
  %v439 = vadd.f32 0.0, %v438
  %v440 = vpop.f32.mrb[0].mxu0
  %v441 = vadd.f32 0.0, %v440
  %v442 = vpop.f32.mrb[0].mxu0
  %v443 = vpop.f32.mrb[0].mxu0
  %444 = vdwg.mxu0
  %v445 = vmax.f32 %v187, %v398
  %v446 = vmax.f32 %v189, %v400
  %v447 = vmax.f32 %v228, %v439
  %v448 = vmax.f32 %v230, %v441
  %s449 = scalar_lea.vmem %s0, 320
  %v450 = vld [vmem:[%s449] sm:$0xff]
  %v451 = vld [vmem:[%s449 + $0x8] sm:$0xff]
  %v452 = vld [vmem:[%s449 + $0x10] sm:$0xff]
  %v453 = vld [vmem:[%s449 + $0x18] sm:$0xff]
  %v454 = vld [vmem:[%s449 + $0x20] sm:$0xff]
  %v455 = vld [vmem:[%s449 + $0x28] sm:$0xff]
  %v456 = vld [vmem:[%s449 + $0x30] sm:$0xff]
  %v457 = vld [vmem:[%s449 + $0x38] sm:$0xff]
  %v458 = vld [vmem:[%s449 + $0x40] sm:$0xff]
  %v459 = vld [vmem:[%s449 + $0x48] sm:$0xff]
  %v460 = vld [vmem:[%s449 + $0x50] sm:$0xff]
  %v461 = vld [vmem:[%s449 + $0x58] sm:$0xff]
  %v462 = vld [vmem:[%s449 + $0x60] sm:$0xff]
  %v463 = vld [vmem:[%s449 + $0x68] sm:$0xff]
  %v464 = vld [vmem:[%s449 + $0x70] sm:$0xff]
  %v465 = vld [vmem:[%s449 + $0x78] sm:$0xff]
  %v466 = vld [vmem:[%s449 + $0x80] sm:$0xff]
  %v467 = vld [vmem:[%s449 + $0x88] sm:$0xff]
  %v468 = vld [vmem:[%s449 + $0x90] sm:$0x33]
  %v469 = vld [vmem:[%s449 + $0x98] sm:$0x33]
  %v490 = vunpack.c.l.b16 %v450
  %v491 = vunpack.c.h.b16 %v450
  %v492 = vunpack.c.l.b16 %v451
  %v493 = vunpack.c.h.b16 %v451
  %v494 = vunpack.c.l.b16 %v452
  %v495 = vunpack.c.h.b16 %v452
  %v496 = vunpack.c.l.b16 %v453
  %v497 = vunpack.c.h.b16 %v453
  %v498 = vunpack.c.l.b16 %v454
  %v499 = vunpack.c.h.b16 %v454
  %v500 = vunpack.c.l.b16 %v455
  %v501 = vunpack.c.h.b16 %v455
  %v502 = vunpack.c.l.b16 %v456
  %v503 = vunpack.c.h.b16 %v456
  %v504 = vunpack.c.l.b16 %v457
  %v505 = vunpack.c.h.b16 %v457
  %v506 = vunpack.c.l.b16 %v458
  %v507 = vunpack.c.h.b16 %v458
  %v508 = vunpack.c.l.b16 %v459
  %v509 = vunpack.c.h.b16 %v459
  %v510 = vunpack.c.l.b16 %v460
  %v511 = vunpack.c.h.b16 %v460
  %v512 = vunpack.c.l.b16 %v461
  %v513 = vunpack.c.h.b16 %v461
  %v514 = vunpack.c.l.b16 %v462
  %v515 = vunpack.c.h.b16 %v462
  %v516 = vunpack.c.l.b16 %v463
  %v517 = vunpack.c.h.b16 %v463
  %v518 = vunpack.c.l.b16 %v464
  %v519 = vunpack.c.h.b16 %v464
  %v520 = vunpack.c.l.b16 %v465
  %v521 = vunpack.c.h.b16 %v465
  %v522 = vunpack.c.l.b16 %v466
  %v523 = vunpack.c.h.b16 %v466
  %v524 = vunpack.c.l.b16 %v467
  %v525 = vunpack.c.h.b16 %v467
  %v526 = vunpack.c.l.b16 %v468
  %v527 = vunpack.c.h.b16 %v468
  %v528 = vunpack.c.l.b16 %v469
  %v529 = vunpack.c.h.b16 %v469
  %v530 = vpack.c.b16 %v494, %v490
  %v531 = vpack.c.b16 %v495, %v491
  %v532 = vpack.c.b16 %v496, %v492
  %v533 = vpack.c.b16 %v497, %v493
  %v534 = vpack.c.b16 %v502, %v498
  %v535 = vpack.c.b16 %v503, %v499
  %v536 = vpack.c.b16 %v504, %v500
  %v537 = vpack.c.b16 %v505, %v501
  %v538 = vpack.c.b16 %v510, %v506
  %v539 = vpack.c.b16 %v511, %v507
  %v540 = vpack.c.b16 %v512, %v508
  %v541 = vpack.c.b16 %v513, %v509
  %v542 = vpack.c.b16 %v518, %v514
  %v543 = vpack.c.b16 %v519, %v515
  %v544 = vpack.c.b16 %v520, %v516
  %v545 = vpack.c.b16 %v521, %v517
  %v546 = vpack.c.b16 %v526, %v522
  %v547 = vpack.c.b16 %v527, %v523
  %v548 = vpack.c.b16 %v528, %v524
  %v549 = vpack.c.b16 %v529, %v525
  %v567 = vand.u32 %v546, %v139
  %v570 = vand.u32 %v547, %v139
  %v573 = vand.u32 %v548, %v139
  %v576 = vand.u32 %v549, %v139
  %578 = vmatprep.subr.bf16.mxu0 %v531
  %579 = vmatpush1.bf16.msra.mxu0 %v530
  %580 = vmatprep.subr.bf16.mxu0 %v535
  %581 = vmatpush1.bf16.msra.mxu0 %v534
  %582 = vmatprep.subr.bf16.mxu0 %v539
  %583 = vmatpush1.bf16.msra.mxu0 %v538
  %584 = vmatprep.subr.bf16.mxu0 %v543
  %585 = vmatpush1.bf16.msra.mxu0 %v542
  %586 = vmatprep.subr.bf16.mxu0 %v570
  %587 = vmatpush1.bf16.msra.mxu0 %v567
  %588 = vmatprep.subr.bf16.mxu0 0
  %589 = vmatpush1.bf16.msra.mxu0 0
  %590 = vmatprep.subr.bf16.mxu0 0
  %591 = vmatpush1.bf16.msra.mxu0 0
  %592 = vmatprep.subr.bf16.mxu0 0
  %593 = vmatpush1.bf16.msra.mxu0 0
  %594 = vmatprep.subr.bf16.mxu0 0
  %595 = vmatpush1.bf16.msra.mxu0 0
  %596 = vmatprep.subr.bf16.mxu0 0
  %597 = vmatpush1.bf16.msra.mxu0 0
  %598 = vmatprep.subr.bf16.mxu0 0
  %599 = vmatpush1.bf16.msra.mxu0 0
  %600 = vmatprep.subr.bf16.mxu0 0
  %601 = vmatpush1.bf16.msra.mxu0 0
  %602 = vmatprep.subr.bf16.mxu0 0
  %603 = vmatpush1.bf16.msra.mxu0 0
  %604 = vmatprep.subr.bf16.mxu0 0
  %605 = vmatpush1.bf16.msra.mxu0 0
  %606 = vmatprep.subr.bf16.mxu0 0
  %607 = vmatpush1.bf16.msra.mxu0 0
  %608 = vmatprep.subr.bf16.mxu0 0
  %609 = vmatpush1.bf16.msra.mxu0 0
  %610 = vmatprep.mubr.bf16.mxu0 0
  %611 = vmatmul.mubr.bf16.gmra.mrb[0].mxu0 %v134
  %v612 = vpop.f32.mrb[0].mxu0
  %v613 = vadd.f32 0.0, %v612
  %v614 = vpop.f32.mrb[0].mxu0
  %v615 = vadd.f32 0.0, %v614
  %v616 = vpop.f32.mrb[0].mxu0
  %v617 = vpop.f32.mrb[0].mxu0
  %618 = vdwg.mxu0
  %619 = vmatprep.subr.bf16.mxu0 %v533
  %620 = vmatpush1.bf16.msra.mxu0 %v532
  %621 = vmatprep.subr.bf16.mxu0 %v537
  %622 = vmatpush1.bf16.msra.mxu0 %v536
  %623 = vmatprep.subr.bf16.mxu0 %v541
  %624 = vmatpush1.bf16.msra.mxu0 %v540
  %625 = vmatprep.subr.bf16.mxu0 %v545
  %626 = vmatpush1.bf16.msra.mxu0 %v544
  %627 = vmatprep.subr.bf16.mxu0 %v576
  %628 = vmatpush1.bf16.msra.mxu0 %v573
  %629 = vmatprep.subr.bf16.mxu0 0
  %630 = vmatpush1.bf16.msra.mxu0 0
  %631 = vmatprep.subr.bf16.mxu0 0
  %632 = vmatpush1.bf16.msra.mxu0 0
  %633 = vmatprep.subr.bf16.mxu0 0
  %634 = vmatpush1.bf16.msra.mxu0 0
  %635 = vmatprep.subr.bf16.mxu0 0
  %636 = vmatpush1.bf16.msra.mxu0 0
  %637 = vmatprep.subr.bf16.mxu0 0
  %638 = vmatpush1.bf16.msra.mxu0 0
  %639 = vmatprep.subr.bf16.mxu0 0
  %640 = vmatpush1.bf16.msra.mxu0 0
  %641 = vmatprep.subr.bf16.mxu0 0
  %642 = vmatpush1.bf16.msra.mxu0 0
  %643 = vmatprep.subr.bf16.mxu0 0
  %644 = vmatpush1.bf16.msra.mxu0 0
  %645 = vmatprep.subr.bf16.mxu0 0
  %646 = vmatpush1.bf16.msra.mxu0 0
  %647 = vmatprep.subr.bf16.mxu0 0
  %648 = vmatpush1.bf16.msra.mxu0 0
  %649 = vmatprep.subr.bf16.mxu0 0
  %650 = vmatpush1.bf16.msra.mxu0 0
  %651 = vmatprep.mubr.bf16.mxu0 0
  %652 = vmatmul.mubr.bf16.gmra.mrb[0].mxu0 %v134
  %v653 = vpop.f32.mrb[0].mxu0
  %v654 = vadd.f32 0.0, %v653
  %v655 = vpop.f32.mrb[0].mxu0
  %v656 = vadd.f32 0.0, %v655
  %v657 = vpop.f32.mrb[0].mxu0
  %v658 = vpop.f32.mrb[0].mxu0
  %659 = vdwg.mxu0
  %v660 = vmax.f32 %v445, %v613
  %v661 = vmax.f32 %v446, %v615
  %v662 = vmax.f32 %v447, %v654
  %v663 = vmax.f32 %v448, %v656
  %s664 = scalar_lea.vmem %s0, 480
  %v665 = vld [vmem:[%s664] sm:$0xff]
  %v666 = vld [vmem:[%s664 + $0x8] sm:$0xff]
  %v667 = vld [vmem:[%s664 + $0x10] sm:$0xff]
  %v668 = vld [vmem:[%s664 + $0x18] sm:$0xff]
  %v669 = vld [vmem:[%s664 + $0x20] sm:$0xff]
  %v670 = vld [vmem:[%s664 + $0x28] sm:$0xff]
  %v671 = vld [vmem:[%s664 + $0x30] sm:$0xff]
  %v672 = vld [vmem:[%s664 + $0x38] sm:$0xff]
  %v673 = vld [vmem:[%s664 + $0x40] sm:$0xff]
  %v674 = vld [vmem:[%s664 + $0x48] sm:$0xff]
  %v675 = vld [vmem:[%s664 + $0x50] sm:$0xff]
  %v676 = vld [vmem:[%s664 + $0x58] sm:$0xff]
  %v677 = vld [vmem:[%s664 + $0x60] sm:$0xff]
  %v678 = vld [vmem:[%s664 + $0x68] sm:$0xff]
  %v679 = vld [vmem:[%s664 + $0x70] sm:$0xff]
  %v680 = vld [vmem:[%s664 + $0x78] sm:$0xff]
  %v681 = vld [vmem:[%s664 + $0x80] sm:$0xff]
  %v682 = vld [vmem:[%s664 + $0x88] sm:$0xff]
  %v683 = vld [vmem:[%s664 + $0x90] sm:$0x33]
  %v684 = vld [vmem:[%s664 + $0x98] sm:$0x33]
  %v705 = vunpack.c.l.b16 %v665
  %v706 = vunpack.c.h.b16 %v665
  %v707 = vunpack.c.l.b16 %v666
  %v708 = vunpack.c.h.b16 %v666
  %v709 = vunpack.c.l.b16 %v667
  %v710 = vunpack.c.h.b16 %v667
  %v711 = vunpack.c.l.b16 %v668
  %v712 = vunpack.c.h.b16 %v668
  %v713 = vunpack.c.l.b16 %v669
  %v714 = vunpack.c.h.b16 %v669
  %v715 = vunpack.c.l.b16 %v670
  %v716 = vunpack.c.h.b16 %v670
  %v717 = vunpack.c.l.b16 %v671
  %v718 = vunpack.c.h.b16 %v671
  %v719 = vunpack.c.l.b16 %v672
  %v720 = vunpack.c.h.b16 %v672
  %v721 = vunpack.c.l.b16 %v673
  %v722 = vunpack.c.h.b16 %v673
  %v723 = vunpack.c.l.b16 %v674
  %v724 = vunpack.c.h.b16 %v674
  %v725 = vunpack.c.l.b16 %v675
  %v726 = vunpack.c.h.b16 %v675
  %v727 = vunpack.c.l.b16 %v676
  %v728 = vunpack.c.h.b16 %v676
  %v729 = vunpack.c.l.b16 %v677
  %v730 = vunpack.c.h.b16 %v677
  %v731 = vunpack.c.l.b16 %v678
  %v732 = vunpack.c.h.b16 %v678
  %v733 = vunpack.c.l.b16 %v679
  %v734 = vunpack.c.h.b16 %v679
  %v735 = vunpack.c.l.b16 %v680
  %v736 = vunpack.c.h.b16 %v680
  %v737 = vunpack.c.l.b16 %v681
  %v738 = vunpack.c.h.b16 %v681
  %v739 = vunpack.c.l.b16 %v682
  %v740 = vunpack.c.h.b16 %v682
  %v741 = vunpack.c.l.b16 %v683
  %v742 = vunpack.c.h.b16 %v683
  %v743 = vunpack.c.l.b16 %v684
  %v744 = vunpack.c.h.b16 %v684
  %v745 = vpack.c.b16 %v709, %v705
  %v746 = vpack.c.b16 %v710, %v706
  %v747 = vpack.c.b16 %v711, %v707
  %v748 = vpack.c.b16 %v712, %v708
  %v749 = vpack.c.b16 %v717, %v713
  %v750 = vpack.c.b16 %v718, %v714
  %v751 = vpack.c.b16 %v719, %v715
  %v752 = vpack.c.b16 %v720, %v716
  %v753 = vpack.c.b16 %v725, %v721
  %v754 = vpack.c.b16 %v726, %v722
  %v755 = vpack.c.b16 %v727, %v723
  %v756 = vpack.c.b16 %v728, %v724
  %v757 = vpack.c.b16 %v733, %v729
  %v758 = vpack.c.b16 %v734, %v730
  %v759 = vpack.c.b16 %v735, %v731
  %v760 = vpack.c.b16 %v736, %v732
  %v761 = vpack.c.b16 %v741, %v737
  %v762 = vpack.c.b16 %v742, %v738
  %v763 = vpack.c.b16 %v743, %v739
  %v764 = vpack.c.b16 %v744, %v740
  %v782 = vand.u32 %v761, %v139
  %v785 = vand.u32 %v762, %v139
  %v788 = vand.u32 %v763, %v139
  %v791 = vand.u32 %v764, %v139
  %793 = vmatprep.subr.bf16.mxu0 %v746
  %794 = vmatpush1.bf16.msra.mxu0 %v745
  %795 = vmatprep.subr.bf16.mxu0 %v750
  %796 = vmatpush1.bf16.msra.mxu0 %v749
  %797 = vmatprep.subr.bf16.mxu0 %v754
  %798 = vmatpush1.bf16.msra.mxu0 %v753
  %799 = vmatprep.subr.bf16.mxu0 %v758
  %800 = vmatpush1.bf16.msra.mxu0 %v757
  %801 = vmatprep.subr.bf16.mxu0 %v785
  %802 = vmatpush1.bf16.msra.mxu0 %v782
  %803 = vmatprep.subr.bf16.mxu0 0
  %804 = vmatpush1.bf16.msra.mxu0 0
  %805 = vmatprep.subr.bf16.mxu0 0
  %806 = vmatpush1.bf16.msra.mxu0 0
  %807 = vmatprep.subr.bf16.mxu0 0
  %808 = vmatpush1.bf16.msra.mxu0 0
  %809 = vmatprep.subr.bf16.mxu0 0
  %810 = vmatpush1.bf16.msra.mxu0 0
  %811 = vmatprep.subr.bf16.mxu0 0
  %812 = vmatpush1.bf16.msra.mxu0 0
  %813 = vmatprep.subr.bf16.mxu0 0
  %814 = vmatpush1.bf16.msra.mxu0 0
  %815 = vmatprep.subr.bf16.mxu0 0
  %816 = vmatpush1.bf16.msra.mxu0 0
  %817 = vmatprep.subr.bf16.mxu0 0
  %818 = vmatpush1.bf16.msra.mxu0 0
  %819 = vmatprep.subr.bf16.mxu0 0
  %820 = vmatpush1.bf16.msra.mxu0 0
  %821 = vmatprep.subr.bf16.mxu0 0
  %822 = vmatpush1.bf16.msra.mxu0 0
  %823 = vmatprep.subr.bf16.mxu0 0
  %824 = vmatpush1.bf16.msra.mxu0 0
  %825 = vmatprep.mubr.bf16.mxu0 0
  %826 = vmatmul.mubr.bf16.gmra.mrb[0].mxu0 %v134
  %v827 = vpop.f32.mrb[0].mxu0
  %v828 = vadd.f32 0.0, %v827
  %v829 = vpop.f32.mrb[0].mxu0
  %v830 = vadd.f32 0.0, %v829
  %v831 = vpop.f32.mrb[0].mxu0
  %v832 = vpop.f32.mrb[0].mxu0
  %833 = vdwg.mxu0
  %834 = vmatprep.subr.bf16.mxu0 %v748
  %835 = vmatpush1.bf16.msra.mxu0 %v747
  %836 = vmatprep.subr.bf16.mxu0 %v752
  %837 = vmatpush1.bf16.msra.mxu0 %v751
  %838 = vmatprep.subr.bf16.mxu0 %v756
  %839 = vmatpush1.bf16.msra.mxu0 %v755
  %840 = vmatprep.subr.bf16.mxu0 %v760
  %841 = vmatpush1.bf16.msra.mxu0 %v759
  %842 = vmatprep.subr.bf16.mxu0 %v791
  %843 = vmatpush1.bf16.msra.mxu0 %v788
  %844 = vmatprep.subr.bf16.mxu0 0
  %845 = vmatpush1.bf16.msra.mxu0 0
  %846 = vmatprep.subr.bf16.mxu0 0
  %847 = vmatpush1.bf16.msra.mxu0 0
  %848 = vmatprep.subr.bf16.mxu0 0
  %849 = vmatpush1.bf16.msra.mxu0 0
  %850 = vmatprep.subr.bf16.mxu0 0
  %851 = vmatpush1.bf16.msra.mxu0 0
  %852 = vmatprep.subr.bf16.mxu0 0
  %853 = vmatpush1.bf16.msra.mxu0 0
  %854 = vmatprep.subr.bf16.mxu0 0
  %855 = vmatpush1.bf16.msra.mxu0 0
  %856 = vmatprep.subr.bf16.mxu0 0
  %857 = vmatpush1.bf16.msra.mxu0 0
  %858 = vmatprep.subr.bf16.mxu0 0
  %859 = vmatpush1.bf16.msra.mxu0 0
  %860 = vmatprep.subr.bf16.mxu0 0
  %861 = vmatpush1.bf16.msra.mxu0 0
  %862 = vmatprep.subr.bf16.mxu0 0
  %863 = vmatpush1.bf16.msra.mxu0 0
  %864 = vmatprep.subr.bf16.mxu0 0
  %865 = vmatpush1.bf16.msra.mxu0 0
  %866 = vmatprep.mubr.bf16.mxu0 0
  %867 = vmatmul.mubr.bf16.gmra.mrb[0].mxu0 %v134
  %v868 = vpop.f32.mrb[0].mxu0
  %v869 = vadd.f32 0.0, %v868
  %v870 = vpop.f32.mrb[0].mxu0
  %v871 = vadd.f32 0.0, %v870
  %v872 = vpop.f32.mrb[0].mxu0
  %v873 = vpop.f32.mrb[0].mxu0
  %874 = vdwg.mxu0
  %v875 = vmax.f32 %v660, %v828
  %v876 = vmax.f32 %v661, %v830
  %v877 = vmax.f32 %v662, %v869
  %v878 = vmax.f32 %v663, %v871
  %v879 = vld [vmem:[%s2] sm:$0x3f]
  %881 = vset.pattern.permute.xlu0 0
  %882 = vperm.xlu0 %881, %v879
  %v883 = vpop.permute.xlu0 %882
  %v885 = vadd.f32 %v875, %v883
  %v886 = vadd.f32 %v876, %v883
  %v887 = vadd.f32 %v877, %v883
  %v888 = vadd.f32 %v878, %v883
  %v889 = vmax.f32 %v885, 0.0
  %v890 = vmax.f32 %v886, 0.0
  %v891 = vmax.f32 %v887, 0.0
  %v892 = vmax.f32 %v888, 0.0
  %v893 = vpack.c.bf16 %v889, %v889
  %v894 = vpack.c.bf16 %v890, %v890
  %v895 = vpack.c.bf16 %v891, %v891
  %v896 = vpack.c.bf16 %v892, %v892
  %v901 = vunpack.c.l.b16 %v893
  %v902 = vunpack.c.l.b16 %v894
  %v903 = vunpack.c.l.b16 %v895
  %v904 = vunpack.c.l.b16 %v896
  %v905 = vpack.c.b16 %v902, %v901
  %v906 = vpack.c.b16 %v904, %v903
  %909 = vst [vmem:[%s3] sm:$0x77] %v905
  %vm910 = vcmask 1042432
  %vm911 = vcmask 63492
  %vm912 = vmor %vm911, %vm910
  %913 = vst.msk [vmem:[%s3 + $0x8] sm:$0x77] %vm912, %v906
  // Predicated region
  $region14: #{convnet_forward.2} parent=0 // pred_check
    _
  $region15: #{convnet_forward.2} parent=0 // pred_check_branch
    %915 = sbr.rel (0) target = $region17
  $region16: #{convnet_forward.2} parent=0 // pred_region
    _
  $region17: #{convnet_forward.2} parent=0 // pred_fallthru
    _
  // Predicated region
  $region18: #{convnet_forward.2} parent=0 // pred_check
    _
  $region19: #{convnet_forward.2} parent=0 // pred_check_branch
    %917 = sbr.rel (0) target = $region21
  $region20: #{convnet_forward.2} parent=0 // pred_region
    _
  $region21: #{convnet_forward.2} parent=0 // pred_fallthru
    _

// kernel: convnet_forward.3
$region0: #{convnet_forward.3}
  #allocation0 [shape = 'u32[]', space=smem, size = 0x4, offset = 0x4, fixed_abs, tag = 'smem constant byte address 0x4 - core index']
  #allocation1 [shape = 'u32[144,128]{1,0:T(1,128)}', space=vmem, size = 0x12000, scoped, tag = 'internal scratch']
  #allocation2 [shape = 'f32[50,16]{1,0:T(8,128)}', space=vmem, size = 0x7000, scoped, tag = 'scratch operand']
  #allocation3 [shape = 'f32[2,400]{1,0:T(2,128)}', space=vmem, size = 0x1000, scoped, tag = 'scratch operand']
  %s0 = inlined_call_operand.vmem [shape: bf16[4,50,150], index: 0, kind: input, shape index: {}]
  %s1 = inlined_call_operand.vmem [shape: bf16[150,16], index: 1, kind: input, shape index: {}]
  %s2 = inlined_call_operand.vmem [shape: f32[1,16], index: 2, kind: input, shape index: {}]
  %s3 = inlined_call_operand.vmem [shape: bf16[400,120], index: 3, kind: input, shape index: {}]
  %s4 = inlined_call_operand.vmem [shape: f32[1,120], index: 4, kind: input, shape index: {}]
  %s5 = inlined_call_operand.vmem [shape: bf16[120,84], index: 5, kind: input, shape index: {}]
  %s6 = inlined_call_operand.vmem [shape: f32[1,84], index: 6, kind: input, shape index: {}]
  %s7 = inlined_call_operand.vmem [shape: bf16[84,10], index: 7, kind: input, shape index: {}]
  %s8 = inlined_call_operand.vmem [shape: f32[1,10], index: 8, kind: input, shape index: {}]
  %s9 = inlined_call_operand.hbm [shape: f32[2,10], index: 9, kind: output, shape index: {}]
  %s10 = sld [smem:[#allocation0]]
  $region46: #{convnet_forward.3} parent=0
    _
  %s12 = ssub.s32 1, %s10
  %s13 = scalar_select 0, %s12, %s10
  $region1: #{convnet_forward.3} parent=0
    #allocation4 [shape = 'u8[1024]{0}', space=vmem, size = 0x400, scoped, tag = 'output window, operand 0, single buffered']
    #allocation5 [shape = 's32[1]{0}', space=sflag, size = 0x4, scoped, tag = 'scoped memory for convnet_forward.3']
    %14 = vsyncpa [#allocation5], 0
    // Predicated region
    $region2: #{convnet_forward.3} parent=1 // pred_check
      _
    $region3: #{convnet_forward.3} parent=1 // pred_check_branch
      %16 = sbr.rel (0) target = $region5
    $region4: #{convnet_forward.3} parent=1 // pred_region
      _
    $region5: #{convnet_forward.3} parent=1 // pred_fallthru
      _
    // Predicated region
    $region6: #{convnet_forward.3} parent=1 // pred_check
      _
    $region7: #{convnet_forward.3} parent=1 // pred_check_branch
      %18 = sbr.rel (0) target = $region9
    $region8: #{convnet_forward.3} parent=1 // pred_region
      _
    $region9: #{convnet_forward.3} parent=1 // pred_fallthru
      _
    // Predicated region
    $region10: #{convnet_forward.3} parent=1 // pred_check
      _
    $region11: #{convnet_forward.3} parent=1 // pred_check_branch
      %20 = sbr.rel (0) target = $region13
    $region12: #{convnet_forward.3} parent=1 // pred_region
      _
    $region13: #{convnet_forward.3} parent=1 // pred_fallthru
      _
    // Predicated region
    $region14: #{convnet_forward.3} parent=1 // pred_check
      _
    $region15: #{convnet_forward.3} parent=1 // pred_check_branch
      %22 = sbr.rel (0) target = $region17
    $region16: #{convnet_forward.3} parent=1 // pred_region
      _
    $region17: #{convnet_forward.3} parent=1 // pred_fallthru
      _
    // Predicated region
    $region18: #{convnet_forward.3} parent=1 // pred_check
      _
    $region19: #{convnet_forward.3} parent=1 // pred_check_branch
      %24 = sbr.rel (0) target = $region21
    $region20: #{convnet_forward.3} parent=1 // pred_region
      _
    $region21: #{convnet_forward.3} parent=1 // pred_fallthru
      _
    // Predicated region
    $region22: #{convnet_forward.3} parent=1 // pred_check
      _
    $region23: #{convnet_forward.3} parent=1 // pred_check_branch
      %26 = sbr.rel (0) target = $region25
    $region24: #{convnet_forward.3} parent=1 // pred_region
      _
    $region25: #{convnet_forward.3} parent=1 // pred_fallthru
      _
    // Predicated region
    $region26: #{convnet_forward.3} parent=1 // pred_check
      _
    $region27: #{convnet_forward.3} parent=1 // pred_check_branch
      %28 = sbr.rel (0) target = $region29
    $region28: #{convnet_forward.3} parent=1 // pred_region
      _
    $region29: #{convnet_forward.3} parent=1 // pred_fallthru
      _
    // Predicated region
    $region30: #{convnet_forward.3} parent=1 // pred_check
      _
    $region31: #{convnet_forward.3} parent=1 // pred_check_branch
      %30 = sbr.rel (0) target = $region33
    $region32: #{convnet_forward.3} parent=1 // pred_region
      _
    $region33: #{convnet_forward.3} parent=1 // pred_fallthru
      _
    // Predicated region
    $region34: #{convnet_forward.3} parent=1 // pred_check
      _
    $region35: #{convnet_forward.3} parent=1 // pred_check_branch
      %32 = sbr.rel (0) target = $region37
    $region36: #{convnet_forward.3} parent=1 // pred_region
      _
    $region37: #{convnet_forward.3} parent=1 // pred_fallthru
      _
    %v34 = vld [vmem:[%s1] sm:$0xf]
    %v35 = vld [vmem:[%s1 + $0x4] sm:$0xf]
    %v36 = vld [vmem:[%s1 + $0x8] sm:$0xf]
    %v37 = vld [vmem:[%s1 + $0xc] sm:$0xf]
    %v38 = vld [vmem:[%s1 + $0x10] sm:$0xf]
    %v39 = vld [vmem:[%s1 + $0x14] sm:$0xf]
    %v40 = vld [vmem:[%s1 + $0x18] sm:$0xf]
    %v41 = vld [vmem:[%s1 + $0x1c] sm:$0xf]
    %v42 = vld [vmem:[%s1 + $0x20] sm:$0xf]
    %v43 = vld [vmem:[%s1 + $0x24] sm:$0xf]
    %v44 = vld [vmem:[%s1 + $0x28] sm:$0xf]
    %v45 = vld [vmem:[%s1 + $0x2c] sm:$0xf]
    %v46 = vld [vmem:[%s1 + $0x30] sm:$0xf]
    %v47 = vld [vmem:[%s1 + $0x34] sm:$0xf]
    %v48 = vld [vmem:[%s1 + $0x38] sm:$0xf]
    %v49 = vld [vmem:[%s1 + $0x3c] sm:$0xf]
    %v50 = vld [vmem:[%s1 + $0x40] sm:$0xf]
    %v51 = vld [vmem:[%s1 + $0x44] sm:$0xf]
    %v52 = vld [vmem:[%s1 + $0x48] sm:$0x7]
    %v53 = vld [vmem:[%s0] sm:$0xff]
    %v54 = vld [vmem:[%s0 + $0x8] sm:$0xff]
    %v55 = vld [vmem:[%s0 + $0x10] sm:$0xff]
    %v56 = vld [vmem:[%s0 + $0x18] sm:$0xff]
    %v57 = vld [vmem:[%s0 + $0x20] sm:$0xff]
    %v58 = vld [vmem:[%s0 + $0x28] sm:$0xff]
    %v59 = vld [vmem:[%s0 + $0x30] sm:$0x11]
    %v67 = vunpack.c.l.b16 %v53
    %v68 = vunpack.c.h.b16 %v53
    %v69 = vunpack.c.l.b16 %v54
    %v70 = vunpack.c.h.b16 %v54
    %v71 = vunpack.c.l.b16 %v55
    %v72 = vunpack.c.h.b16 %v55
    %v73 = vunpack.c.l.b16 %v56
    %v74 = vunpack.c.h.b16 %v56
    %v75 = vunpack.c.l.b16 %v57
    %v76 = vunpack.c.h.b16 %v57
    %v77 = vunpack.c.l.b16 %v58
    %v78 = vunpack.c.h.b16 %v58
    %v79 = vunpack.c.l.b16 %v59
    %v80 = vunpack.c.h.b16 %v59
    %v81 = vpack.c.b16 %v69, %v67
    %v82 = vpack.c.b16 %v70, %v68
    %v83 = vpack.c.b16 %v73, %v71
    %v84 = vpack.c.b16 %v74, %v72
    %v85 = vpack.c.b16 %v77, %v75
    %v86 = vpack.c.b16 %v78, %v76
    %v87 = vpack.c.b16 %v79, %v79
    %v88 = vpack.c.b16 %v80, %v80
    %v112 = vunpack.c.l.b16 %v34
    %v113 = vunpack.c.l.b16 %v35
    %v114 = vunpack.c.l.b16 %v36
    %v115 = vunpack.c.l.b16 %v37
    %v116 = vunpack.c.l.b16 %v38
    %v117 = vunpack.c.l.b16 %v39
    %v118 = vunpack.c.l.b16 %v40
    %v119 = vunpack.c.l.b16 %v41
    %v120 = vunpack.c.l.b16 %v42
    %v121 = vunpack.c.l.b16 %v43
    %v122 = vunpack.c.l.b16 %v44
    %v123 = vunpack.c.l.b16 %v45
    %v124 = vunpack.c.l.b16 %v46
    %v125 = vunpack.c.l.b16 %v47
    %v126 = vunpack.c.l.b16 %v48
    %v127 = vunpack.c.l.b16 %v49
    %v128 = vunpack.c.l.b16 %v50
    %v129 = vunpack.c.l.b16 %v51
    %v130 = vunpack.c.l.b16 %v52
    %v131 = vpack.c.b16 %v113, %v112
    %v132 = vpack.c.b16 %v115, %v114
    %v133 = vpack.c.b16 %v117, %v116
    %v134 = vpack.c.b16 %v119, %v118
    %v135 = vpack.c.b16 %v121, %v120
    %v136 = vpack.c.b16 %v123, %v122
    %v137 = vpack.c.b16 %v125, %v124
    %v138 = vpack.c.b16 %v127, %v126
    %v139 = vpack.c.b16 %v129, %v128
    %v140 = vpack.c.b16 %v130, %v130
    %vm150 = vcmask 179200
    %v152 = vsel %vm150, %v82, 0
    %v155 = vsel %vm150, %v84, 0
    %v158 = vsel %vm150, %v86, 0
    %v161 = vsel %vm150, %v88, 0
    %vm163 = vcmask 1042432
    %v165 = vsel %vm163, %v140, 0
    %167 = vmatprep.subr.bf16.mxu0 0
    %168 = vmatpush1.bf16.msra.mxu0 %v131
    %169 = vmatprep.subr.bf16.mxu0 0
    %170 = vmatpush1.bf16.msra.mxu0 %v132
    %171 = vmatprep.subr.bf16.mxu0 0
    %172 = vmatpush1.bf16.msra.mxu0 %v133
    %173 = vmatprep.subr.bf16.mxu0 0
    %174 = vmatpush1.bf16.msra.mxu0 %v134
    %175 = vmatprep.subr.bf16.mxu0 0
    %176 = vmatpush1.bf16.msra.mxu0 %v135
    %177 = vmatprep.subr.bf16.mxu0 0
    %178 = vmatpush1.bf16.msra.mxu0 %v136
    %179 = vmatprep.subr.bf16.mxu0 0
    %180 = vmatpush1.bf16.msra.mxu0 %v137
    %181 = vmatprep.subr.bf16.mxu0 0
    %182 = vmatpush1.bf16.msra.mxu0 %v138
    %183 = vmatprep.subr.bf16.mxu0 0
    %184 = vmatpush1.bf16.msra.mxu0 %v139
    %185 = vmatprep.subr.bf16.mxu0 0
    %186 = vmatpush1.bf16.msra.mxu0 %v165
    %187 = vmatprep.subr.bf16.mxu0 0
    %188 = vmatpush1.bf16.msra.mxu0 0
    %189 = vmatprep.subr.bf16.mxu0 0
    %190 = vmatpush1.bf16.msra.mxu0 0
    %191 = vmatprep.subr.bf16.mxu0 0
    %192 = vmatpush1.bf16.msra.mxu0 0
    %193 = vmatprep.subr.bf16.mxu0 0
    %194 = vmatpush1.bf16.msra.mxu0 0
    %195 = vmatprep.subr.bf16.mxu0 0
    %196 = vmatpush1.bf16.msra.mxu0 0
    %197 = vmatprep.subr.bf16.mxu0 0
    %198 = vmatpush1.bf16.msra.mxu0 0
    %199 = vmatprep.mubr.bf16.mxu0 %v152
    %200 = vmatmul.mubr.bf16.gmra.mrb[0].mxu0 %v81
    %v201 = vpop.f32.mrb[0].mxu0
    %v202 = vadd.f32 0.0, %v201
    %v203 = vpop.f32.mrb[0].mxu0
    %v204 = vpop.f32.mrb[0].mxu0
    %v205 = vadd.f32 0.0, %v204
    %v206 = vpop.f32.mrb[0].mxu0
    %207 = vmatprep.mubr.bf16.mxu0 %v155
    %208 = vmatmul.mubr.bf16.gmra.mrb[0].mxu0 %v83
    %v209 = vpop.f32.mrb[0].mxu0
    %v210 = vadd.f32 0.0, %v209
    %v211 = vpop.f32.mrb[0].mxu0
    %v212 = vpop.f32.mrb[0].mxu0
    %v213 = vadd.f32 0.0, %v212
    %v214 = vpop.f32.mrb[0].mxu0
    %215 = vmatprep.mubr.bf16.mxu0 %v158
    %216 = vmatmul.mubr.bf16.gmra.mrb[0].mxu0 %v85
    %v217 = vpop.f32.mrb[0].mxu0
    %v218 = vadd.f32 0.0, %v217
    %v219 = vpop.f32.mrb[0].mxu0
    %v220 = vpop.f32.mrb[0].mxu0
    %v221 = vadd.f32 0.0, %v220
    %v222 = vpop.f32.mrb[0].mxu0
    %223 = vmatprep.mubr.bf16.mxu0 %v161
    %224 = vmatmul.mubr.bf16.gmra.mrb[0].mxu0 %v87
    %v225 = vpop.f32.mrb[0].mxu0
    %v226 = vadd.f32 0.0, %v225
    %v227 = vpop.f32.mrb[0].mxu0
    %v228 = vpop.f32.mrb[0].mxu0
    %v229 = vpop.f32.mrb[0].mxu0
    %230 = vdwg.mxu0
    %s231 = scalar_lea.vmem %s0, 56
    %v232 = vld [vmem:[%s231] sm:$0xff]
    %v233 = vld [vmem:[%s231 + $0x8] sm:$0xff]
    %v234 = vld [vmem:[%s231 + $0x10] sm:$0xff]
    %v235 = vld [vmem:[%s231 + $0x18] sm:$0xff]
    %v236 = vld [vmem:[%s231 + $0x20] sm:$0xff]
    %v237 = vld [vmem:[%s231 + $0x28] sm:$0xff]
    %v238 = vld [vmem:[%s231 + $0x30] sm:$0x11]
    %v246 = vunpack.c.l.b16 %v232
    %v247 = vunpack.c.h.b16 %v232
    %v248 = vunpack.c.l.b16 %v233
    %v249 = vunpack.c.h.b16 %v233
    %v250 = vunpack.c.l.b16 %v234
    %v251 = vunpack.c.h.b16 %v234
    %v252 = vunpack.c.l.b16 %v235
    %v253 = vunpack.c.h.b16 %v235
    %v254 = vunpack.c.l.b16 %v236
    %v255 = vunpack.c.h.b16 %v236
    %v256 = vunpack.c.l.b16 %v237
    %v257 = vunpack.c.h.b16 %v237
    %v258 = vunpack.c.l.b16 %v238
    %v259 = vunpack.c.h.b16 %v238
    %v260 = vpack.c.b16 %v248, %v246
    %v261 = vpack.c.b16 %v249, %v247
    %v262 = vpack.c.b16 %v252, %v250
    %v263 = vpack.c.b16 %v253, %v251
    %v264 = vpack.c.b16 %v256, %v254
    %v265 = vpack.c.b16 %v257, %v255
    %v266 = vpack.c.b16 %v258, %v258
    %v267 = vpack.c.b16 %v259, %v259
    %v273 = vsel %vm150, %v261, 0
    %v276 = vsel %vm150, %v263, 0
    %v279 = vsel %vm150, %v265, 0
    %v282 = vsel %vm150, %v267, 0
    %284 = vmatprep.subr.bf16.mxu0 0
    %285 = vmatpush1.bf16.msra.mxu0 %v131
    %286 = vmatprep.subr.bf16.mxu0 0
    %287 = vmatpush1.bf16.msra.mxu0 %v132
    %288 = vmatprep.subr.bf16.mxu0 0
    %289 = vmatpush1.bf16.msra.mxu0 %v133
    %290 = vmatprep.subr.bf16.mxu0 0
    %291 = vmatpush1.bf16.msra.mxu0 %v134
    %292 = vmatprep.subr.bf16.mxu0 0
    %293 = vmatpush1.bf16.msra.mxu0 %v135
    %294 = vmatprep.subr.bf16.mxu0 0
    %295 = vmatpush1.bf16.msra.mxu0 %v136
    %296 = vmatprep.subr.bf16.mxu0 0
    %297 = vmatpush1.bf16.msra.mxu0 %v137
    %298 = vmatprep.subr.bf16.mxu0 0
    %299 = vmatpush1.bf16.msra.mxu0 %v138
    %300 = vmatprep.subr.bf16.mxu0 0
    %301 = vmatpush1.bf16.msra.mxu0 %v139
    %302 = vmatprep.subr.bf16.mxu0 0
    %303 = vmatpush1.bf16.msra.mxu0 %v165
    %304 = vmatprep.subr.bf16.mxu0 0
    %305 = vmatpush1.bf16.msra.mxu0 0
    %306 = vmatprep.subr.bf16.mxu0 0
    %307 = vmatpush1.bf16.msra.mxu0 0
    %308 = vmatprep.subr.bf16.mxu0 0
    %309 = vmatpush1.bf16.msra.mxu0 0
    %310 = vmatprep.subr.bf16.mxu0 0
    %311 = vmatpush1.bf16.msra.mxu0 0
    %312 = vmatprep.subr.bf16.mxu0 0
    %313 = vmatpush1.bf16.msra.mxu0 0
    %314 = vmatprep.subr.bf16.mxu0 0
    %315 = vmatpush1.bf16.msra.mxu0 0
    %316 = vmatprep.mubr.bf16.mxu0 %v273
    %317 = vmatmul.mubr.bf16.gmra.mrb[0].mxu0 %v260
    %v318 = vpop.f32.mrb[0].mxu0
    %v319 = vadd.f32 0.0, %v318
    %v320 = vpop.f32.mrb[0].mxu0
    %v321 = vpop.f32.mrb[0].mxu0
    %v322 = vadd.f32 0.0, %v321
    %v323 = vpop.f32.mrb[0].mxu0
    %324 = vmatprep.mubr.bf16.mxu0 %v276
    %325 = vmatmul.mubr.bf16.gmra.mrb[0].mxu0 %v262
    %v326 = vpop.f32.mrb[0].mxu0
    %v327 = vadd.f32 0.0, %v326
    %v328 = vpop.f32.mrb[0].mxu0
    %v329 = vpop.f32.mrb[0].mxu0
    %v330 = vadd.f32 0.0, %v329
    %v331 = vpop.f32.mrb[0].mxu0
    %332 = vmatprep.mubr.bf16.mxu0 %v279
    %333 = vmatmul.mubr.bf16.gmra.mrb[0].mxu0 %v264
    %v334 = vpop.f32.mrb[0].mxu0
    %v335 = vadd.f32 0.0, %v334
    %v336 = vpop.f32.mrb[0].mxu0
    %v337 = vpop.f32.mrb[0].mxu0
    %v338 = vadd.f32 0.0, %v337
    %v339 = vpop.f32.mrb[0].mxu0
    %340 = vmatprep.mubr.bf16.mxu0 %v282
    %341 = vmatmul.mubr.bf16.gmra.mrb[0].mxu0 %v266
    %v342 = vpop.f32.mrb[0].mxu0
    %v343 = vadd.f32 0.0, %v342
    %v344 = vpop.f32.mrb[0].mxu0
    %v345 = vpop.f32.mrb[0].mxu0
    %v346 = vpop.f32.mrb[0].mxu0
    %347 = vdwg.mxu0
    %v348 = vmax.f32 %v202, %v319
    %v349 = vmax.f32 %v205, %v322
    %v350 = vmax.f32 %v210, %v327
    %v351 = vmax.f32 %v213, %v330
    %v352 = vmax.f32 %v218, %v335
    %v353 = vmax.f32 %v221, %v338
    %v354 = vmax.f32 %v226, %v343
    %s355 = scalar_lea.vmem %s0, 112
    %v356 = vld [vmem:[%s355] sm:$0xff]
    %v357 = vld [vmem:[%s355 + $0x8] sm:$0xff]
    %v358 = vld [vmem:[%s355 + $0x10] sm:$0xff]
    %v359 = vld [vmem:[%s355 + $0x18] sm:$0xff]
    %v360 = vld [vmem:[%s355 + $0x20] sm:$0xff]
    %v361 = vld [vmem:[%s355 + $0x28] sm:$0xff]
    %v362 = vld [vmem:[%s355 + $0x30] sm:$0x11]
    %v370 = vunpack.c.l.b16 %v356
    %v371 = vunpack.c.h.b16 %v356
    %v372 = vunpack.c.l.b16 %v357
    %v373 = vunpack.c.h.b16 %v357
    %v374 = vunpack.c.l.b16 %v358
    %v375 = vunpack.c.h.b16 %v358
    %v376 = vunpack.c.l.b16 %v359
    %v377 = vunpack.c.h.b16 %v359
    %v378 = vunpack.c.l.b16 %v360
    %v379 = vunpack.c.h.b16 %v360
    %v380 = vunpack.c.l.b16 %v361
    %v381 = vunpack.c.h.b16 %v361
    %v382 = vunpack.c.l.b16 %v362
    %v383 = vunpack.c.h.b16 %v362
    %v384 = vpack.c.b16 %v372, %v370
    %v385 = vpack.c.b16 %v373, %v371
    %v386 = vpack.c.b16 %v376, %v374
    %v387 = vpack.c.b16 %v377, %v375
    %v388 = vpack.c.b16 %v380, %v378
    %v389 = vpack.c.b16 %v381, %v379
    %v390 = vpack.c.b16 %v382, %v382
    %v391 = vpack.c.b16 %v383, %v383
    %v397 = vsel %vm150, %v385, 0
    %v400 = vsel %vm150, %v387, 0
    %v403 = vsel %vm150, %v389, 0
    %v406 = vsel %vm150, %v391, 0
    %408 = vmatprep.subr.bf16.mxu0 0
    %409 = vmatpush1.bf16.msra.mxu0 %v131
    %410 = vmatprep.subr.bf16.mxu0 0
    %411 = vmatpush1.bf16.msra.mxu0 %v132
    %412 = vmatprep.subr.bf16.mxu0 0
    %413 = vmatpush1.bf16.msra.mxu0 %v133
    %414 = vmatprep.subr.bf16.mxu0 0
    %415 = vmatpush1.bf16.msra.mxu0 %v134
    %416 = vmatprep.subr.bf16.mxu0 0
    %417 = vmatpush1.bf16.msra.mxu0 %v135
    %418 = vmatprep.subr.bf16.mxu0 0
    %419 = vmatpush1.bf16.msra.mxu0 %v136
    %420 = vmatprep.subr.bf16.mxu0 0
    %421 = vmatpush1.bf16.msra.mxu0 %v137
    %422 = vmatprep.subr.bf16.mxu0 0
    %423 = vmatpush1.bf16.msra.mxu0 %v138
    %424 = vmatprep.subr.bf16.mxu0 0
    %425 = vmatpush1.bf16.msra.mxu0 %v139
    %426 = vmatprep.subr.bf16.mxu0 0
    %427 = vmatpush1.bf16.msra.mxu0 %v165
    %428 = vmatprep.subr.bf16.mxu0 0
    %429 = vmatpush1.bf16.msra.mxu0 0
    %430 = vmatprep.subr.bf16.mxu0 0
    %431 = vmatpush1.bf16.msra.mxu0 0
    %432 = vmatprep.subr.bf16.mxu0 0
    %433 = vmatpush1.bf16.msra.mxu0 0
    %434 = vmatprep.subr.bf16.mxu0 0
    %435 = vmatpush1.bf16.msra.mxu0 0
    %436 = vmatprep.subr.bf16.mxu0 0
    %437 = vmatpush1.bf16.msra.mxu0 0
    %438 = vmatprep.subr.bf16.mxu0 0
    %439 = vmatpush1.bf16.msra.mxu0 0
    %440 = vmatprep.mubr.bf16.mxu0 %v397
    %441 = vmatmul.mubr.bf16.gmra.mrb[0].mxu0 %v384
    %v442 = vpop.f32.mrb[0].mxu0
    %v443 = vadd.f32 0.0, %v442
    %v444 = vpop.f32.mrb[0].mxu0
    %v445 = vpop.f32.mrb[0].mxu0
    %v446 = vadd.f32 0.0, %v445
    %v447 = vpop.f32.mrb[0].mxu0
    %448 = vmatprep.mubr.bf16.mxu0 %v400
    %449 = vmatmul.mubr.bf16.gmra.mrb[0].mxu0 %v386
    %v450 = vpop.f32.mrb[0].mxu0
    %v451 = vadd.f32 0.0, %v450
    %v452 = vpop.f32.mrb[0].mxu0
    %v453 = vpop.f32.mrb[0].mxu0
    %v454 = vadd.f32 0.0, %v453
    %v455 = vpop.f32.mrb[0].mxu0
    %456 = vmatprep.mubr.bf16.mxu0 %v403
    %457 = vmatmul.mubr.bf16.gmra.mrb[0].mxu0 %v388
    %v458 = vpop.f32.mrb[0].mxu0
    %v459 = vadd.f32 0.0, %v458
    %v460 = vpop.f32.mrb[0].mxu0
    %v461 = vpop.f32.mrb[0].mxu0
    %v462 = vadd.f32 0.0, %v461
    %v463 = vpop.f32.mrb[0].mxu0
    %464 = vmatprep.mubr.bf16.mxu0 %v406
    %465 = vmatmul.mubr.bf16.gmra.mrb[0].mxu0 %v390
    %v466 = vpop.f32.mrb[0].mxu0
    %v467 = vadd.f32 0.0, %v466
    %v468 = vpop.f32.mrb[0].mxu0
    %v469 = vpop.f32.mrb[0].mxu0
    %v470 = vpop.f32.mrb[0].mxu0
    %471 = vdwg.mxu0
    %v472 = vmax.f32 %v348, %v443
    %v473 = vmax.f32 %v349, %v446
    %v474 = vmax.f32 %v350, %v451
    %v475 = vmax.f32 %v351, %v454
    %v476 = vmax.f32 %v352, %v459
    %v477 = vmax.f32 %v353, %v462
    %v478 = vmax.f32 %v354, %v467
    %s479 = scalar_lea.vmem %s0, 168
    %v480 = vld [vmem:[%s479] sm:$0xff]
    %v481 = vld [vmem:[%s479 + $0x8] sm:$0xff]
    %v482 = vld [vmem:[%s479 + $0x10] sm:$0xff]
    %v483 = vld [vmem:[%s479 + $0x18] sm:$0xff]
    %v484 = vld [vmem:[%s479 + $0x20] sm:$0xff]
    %v485 = vld [vmem:[%s479 + $0x28] sm:$0xff]
    %v486 = vld [vmem:[%s479 + $0x30] sm:$0x11]
    %v494 = vunpack.c.l.b16 %v480
    %v495 = vunpack.c.h.b16 %v480
    %v496 = vunpack.c.l.b16 %v481
    %v497 = vunpack.c.h.b16 %v481
    %v498 = vunpack.c.l.b16 %v482
    %v499 = vunpack.c.h.b16 %v482
    %v500 = vunpack.c.l.b16 %v483
    %v501 = vunpack.c.h.b16 %v483
    %v502 = vunpack.c.l.b16 %v484
    %v503 = vunpack.c.h.b16 %v484
    %v504 = vunpack.c.l.b16 %v485
    %v505 = vunpack.c.h.b16 %v485
    %v506 = vunpack.c.l.b16 %v486
    %v507 = vunpack.c.h.b16 %v486
    %v508 = vpack.c.b16 %v496, %v494
    %v509 = vpack.c.b16 %v497, %v495
    %v510 = vpack.c.b16 %v500, %v498
    %v511 = vpack.c.b16 %v501, %v499
    %v512 = vpack.c.b16 %v504, %v502
    %v513 = vpack.c.b16 %v505, %v503
    %v514 = vpack.c.b16 %v506, %v506
    %v515 = vpack.c.b16 %v507, %v507
    %v521 = vsel %vm150, %v509, 0
    %v524 = vsel %vm150, %v511, 0
    %v527 = vsel %vm150, %v513, 0
    %v530 = vsel %vm150, %v515, 0
    %532 = vmatprep.subr.bf16.mxu0 0
    %533 = vmatpush1.bf16.msra.mxu0 %v131
    %534 = vmatprep.subr.bf16.mxu0 0
    %535 = vmatpush1.bf16.msra.mxu0 %v132
    %536 = vmatprep.subr.bf16.mxu0 0
    %537 = vmatpush1.bf16.msra.mxu0 %v133
    %538 = vmatprep.subr.bf16.mxu0 0
    %539 = vmatpush1.bf16.msra.mxu0 %v134
    %540 = vmatprep.subr.bf16.mxu0 0
    %541 = vmatpush1.bf16.msra.mxu0 %v135
    %542 = vmatprep.subr.bf16.mxu0 0
    %543 = vmatpush1.bf16.msra.mxu0 %v136
    %544 = vmatprep.subr.bf16.mxu0 0
    %545 = vmatpush1.bf16.msra.mxu0 %v137
    %546 = vmatprep.subr.bf16.mxu0 0
    %547 = vmatpush1.bf16.msra.mxu0 %v138
    %548 = vmatprep.subr.bf16.mxu0 0
    %549 = vmatpush1.bf16.msra.mxu0 %v139
    %550 = vmatprep.subr.bf16.mxu0 0
    %551 = vmatpush1.bf16.msra.mxu0 %v165
    %552 = vmatprep.subr.bf16.mxu0 0
    %553 = vmatpush1.bf16.msra.mxu0 0
    %554 = vmatprep.subr.bf16.mxu0 0
    %555 = vmatpush1.bf16.msra.mxu0 0
    %556 = vmatprep.subr.bf16.mxu0 0
    %557 = vmatpush1.bf16.msra.mxu0 0
    %558 = vmatprep.subr.bf16.mxu0 0
    %559 = vmatpush1.bf16.msra.mxu0 0
    %560 = vmatprep.subr.bf16.mxu0 0
    %561 = vmatpush1.bf16.msra.mxu0 0
    %562 = vmatprep.subr.bf16.mxu0 0
    %563 = vmatpush1.bf16.msra.mxu0 0
    %564 = vmatprep.mubr.bf16.mxu0 %v521
    %565 = vmatmul.mubr.bf16.gmra.mrb[0].mxu0 %v508
    %v566 = vpop.f32.mrb[0].mxu0
    %v567 = vadd.f32 0.0, %v566
    %v568 = vpop.f32.mrb[0].mxu0
    %v569 = vpop.f32.mrb[0].mxu0
    %v570 = vadd.f32 0.0, %v569
    %v571 = vpop.f32.mrb[0].mxu0
    %572 = vmatprep.mubr.bf16.mxu0 %v524
    %573 = vmatmul.mubr.bf16.gmra.mrb[0].mxu0 %v510
    %v574 = vpop.f32.mrb[0].mxu0
    %v575 = vadd.f32 0.0, %v574
    %v576 = vpop.f32.mrb[0].mxu0
    %v577 = vpop.f32.mrb[0].mxu0
    %v578 = vadd.f32 0.0, %v577
    %v579 = vpop.f32.mrb[0].mxu0
    %580 = vmatprep.mubr.bf16.mxu0 %v527
    %581 = vmatmul.mubr.bf16.gmra.mrb[0].mxu0 %v512
    %v582 = vpop.f32.mrb[0].mxu0
    %v583 = vadd.f32 0.0, %v582
    %v584 = vpop.f32.mrb[0].mxu0
    %v585 = vpop.f32.mrb[0].mxu0
    %v586 = vadd.f32 0.0, %v585
    %v587 = vpop.f32.mrb[0].mxu0
    %588 = vmatprep.mubr.bf16.mxu0 %v530
    %589 = vmatmul.mubr.bf16.gmra.mrb[0].mxu0 %v514
    %v590 = vpop.f32.mrb[0].mxu0
    %v591 = vadd.f32 0.0, %v590
    %v592 = vpop.f32.mrb[0].mxu0
    %v593 = vpop.f32.mrb[0].mxu0
    %v594 = vpop.f32.mrb[0].mxu0
    %595 = vdwg.mxu0
    %v596 = vmax.f32 %v472, %v567
    %v597 = vmax.f32 %v473, %v570
    %v598 = vmax.f32 %v474, %v575
    %v599 = vmax.f32 %v475, %v578
    %v600 = vmax.f32 %v476, %v583
    %v601 = vmax.f32 %v477, %v586
    %v602 = vmax.f32 %v478, %v591
    %v603 = vld [vmem:[%s2] sm:$0x1]
    %v605 = vlaneseq
    %v606 = vshrl.u32 %v605, 7
    %v607 = vsub.s32 0, %v606
    %v608 = vrot.slane %v603, %v607
    %v610 = vadd.f32 %v596, %v608
    %v611 = vadd.f32 %v597, %v608
    %v612 = vadd.f32 %v598, %v608
    %v613 = vadd.f32 %v599, %v608
    %v614 = vadd.f32 %v600, %v608
    %v615 = vadd.f32 %v601, %v608
    %v616 = vadd.f32 %v602, %v608
    %v617 = vmax.f32 %v610, 0.0
    %v618 = vmax.f32 %v611, 0.0
    %v619 = vmax.f32 %v612, 0.0
    %v620 = vmax.f32 %v613, 0.0
    %v621 = vmax.f32 %v614, 0.0
    %v622 = vmax.f32 %v615, 0.0
    %v623 = vmax.f32 %v616, 0.0
    %vm624 = vcmask 130048
    %625 = vst.msk [vmem:[#allocation2] sm:$0xff] %vm624, %v617
    %626 = vst.msk [vmem:[#allocation2 + $0x8] sm:$0xff] %vm624, %v618
    %627 = vst.msk [vmem:[#allocation2 + $0x10] sm:$0xff] %vm624, %v619
    %628 = vst.msk [vmem:[#allocation2 + $0x18] sm:$0xff] %vm624, %v620
    %629 = vst.msk [vmem:[#allocation2 + $0x20] sm:$0xff] %vm624, %v621
    %630 = vst.msk [vmem:[#allocation2 + $0x28] sm:$0xff] %vm624, %v622
    %vm631 = vcmask 123904
    %632 = vst.msk [vmem:[#allocation2 + $0x30] sm:$0x3] %vm631, %v623
    %v633 = vld [vmem:[#allocation2] sm:$0x3]
    %634 = vst.msk [vmem:[#allocation3] sm:$0x3] %vm631, %v633
    %v635 = vld [vmem:[#allocation2 + $0x2] sm:$0x3]
    %v638 = vunpack.c.l.s4 1983009808
    %v639 = vunpack.c.0.s8 %v638
    %v640 = vlaneseq
    %v641 = vshrl.u32 %v640, 7
    %v642 = vsub.s32 %v639, %v641
    %v643 = vrot.slane %v635, %v642
    %644 = vrot.lane.b32.xlu0 %v643, 16
    %v645 = vpop.permute.xlu0 %644
    %vm647 = vcmask 255104
    %648 = vst.msk [vmem:[#allocation3] sm:$0x3] %vm647, %v645
    %v649 = vld [vmem:[#allocation2 + $0x4] sm:$0x3]
    %v652 = vunpack.c.l.s4 1983009808
    %v653 = vunpack.c.0.s8 %v652
    %v654 = vlaneseq
    %v655 = vshrl.u32 %v654, 7
    %v656 = vsub.s32 %v653, %v655
    %v657 = vrot.slane %v649, %v656
    %658 = vrot.lane.b32.xlu0 %v657, 32
    %v659 = vpop.permute.xlu0 %658
    %vm661 = vcmask 386304
    %662 = vst.msk [vmem:[#allocation3] sm:$0x3] %vm661, %v659
    %v663 = vld [vmem:[#allocation2 + $0x6] sm:$0x3]
    %v666 = vunpack.c.l.s4 1983009808
    %v667 = vunpack.c.0.s8 %v666
    %v668 = vlaneseq
    %v669 = vshrl.u32 %v668, 7
    %v670 = vsub.s32 %v667, %v669
    %v671 = vrot.slane %v663, %v670
    %672 = vrot.lane.b32.xlu0 %v671, 48
    %v673 = vpop.permute.xlu0 %672
    %vm675 = vcmask 517504
    %676 = vst.msk [vmem:[#allocation3] sm:$0x3] %vm675, %v673
    %v677 = vld [vmem:[#allocation2 + $0x8] sm:$0x3]
    %v680 = vunpack.c.l.s4 1983009808
    %v681 = vunpack.c.0.s8 %v680
    %v682 = vlaneseq
    %v683 = vshrl.u32 %v682, 7
    %v684 = vsub.s32 %v681, %v683
    %v685 = vrot.slane %v677, %v684
    %686 = vrot.lane.b32.xlu0 %v685, 64
    %v687 = vpop.permute.xlu0 %686
    %vm689 = vcmask 648704
    %690 = vst.msk [vmem:[#allocation3] sm:$0x3] %vm689, %v687
    %v691 = vld [vmem:[#allocation2 + $0xa] sm:$0x3]
    %v694 = vunpack.c.l.s4 1983009808
    %v695 = vunpack.c.0.s8 %v694
    %v696 = vlaneseq
    %v697 = vshrl.u32 %v696, 7
    %v698 = vsub.s32 %v695, %v697
    %v699 = vrot.slane %v691, %v698
    %700 = vrot.lane.b32.xlu0 %v699, 80
    %v701 = vpop.permute.xlu0 %700
    %vm703 = vcmask 779904
    %704 = vst.msk [vmem:[#allocation3] sm:$0x3] %vm703, %v701
    %v705 = vld [vmem:[#allocation2 + $0xc] sm:$0x3]
    %v708 = vunpack.c.l.s4 1983009808
    %v709 = vunpack.c.0.s8 %v708
    %v710 = vlaneseq
    %v711 = vshrl.u32 %v710, 7
    %v712 = vsub.s32 %v709, %v711
    %v713 = vrot.slane %v705, %v712
    %714 = vrot.lane.b32.xlu0 %v713, 96
    %v715 = vpop.permute.xlu0 %714
    %vm717 = vcmask 911104
    %718 = vst.msk [vmem:[#allocation3] sm:$0x3] %vm717, %v715
    %v719 = vld [vmem:[#allocation2 + $0xe] sm:$0x3]
    %v722 = vunpack.c.l.s4 1983009808
    %v723 = vunpack.c.0.s8 %v722
    %v724 = vlaneseq
    %v725 = vshrl.u32 %v724, 7
    %v726 = vsub.s32 %v723, %v725
    %v727 = vrot.slane %v719, %v726
    %728 = vrot.lane.b32.xlu0 %v727, 112
    %v729 = vpop.permute.xlu0 %728
    %vm731 = vcmask 1042304
    %732 = vst.msk [vmem:[#allocation3] sm:$0x3] %vm731, %v729
    %v733 = vld [vmem:[#allocation2 + $0x10] sm:$0x3]
    %734 = vst.msk [vmem:[#allocation3 + $0x2] sm:$0x3] %vm631, %v733
    %v735 = vld [vmem:[#allocation2 + $0x12] sm:$0x3]
    %v738 = vunpack.c.l.s4 1983009808
    %v739 = vunpack.c.0.s8 %v738
    %v740 = vlaneseq
    %v741 = vshrl.u32 %v740, 7
    %v742 = vsub.s32 %v739, %v741
    %v743 = vrot.slane %v735, %v742
    %744 = vrot.lane.b32.xlu0 %v743, 16
    %v745 = vpop.permute.xlu0 %744
    %747 = vst.msk [vmem:[#allocation3 + $0x2] sm:$0x3] %vm647, %v745
    %v748 = vld [vmem:[#allocation2 + $0x14] sm:$0x3]
    %v751 = vunpack.c.l.s4 1983009808
    %v752 = vunpack.c.0.s8 %v751
    %v753 = vlaneseq
    %v754 = vshrl.u32 %v753, 7
    %v755 = vsub.s32 %v752, %v754
    %v756 = vrot.slane %v748, %v755
    %757 = vrot.lane.b32.xlu0 %v756, 32
    %v758 = vpop.permute.xlu0 %757
    %760 = vst.msk [vmem:[#allocation3 + $0x2] sm:$0x3] %vm661, %v758
    %v761 = vld [vmem:[#allocation2 + $0x16] sm:$0x3]
    %v764 = vunpack.c.l.s4 1983009808
    %v765 = vunpack.c.0.s8 %v764
    %v766 = vlaneseq
    %v767 = vshrl.u32 %v766, 7
    %v768 = vsub.s32 %v765, %v767
    %v769 = vrot.slane %v761, %v768
    %770 = vrot.lane.b32.xlu0 %v769, 48
    %v771 = vpop.permute.xlu0 %770
    %773 = vst.msk [vmem:[#allocation3 + $0x2] sm:$0x3] %vm675, %v771
    %v774 = vld [vmem:[#allocation2 + $0x18] sm:$0x3]
    %v777 = vunpack.c.l.s4 1983009808
    %v778 = vunpack.c.0.s8 %v777
    %v779 = vlaneseq
    %v780 = vshrl.u32 %v779, 7
    %v781 = vsub.s32 %v778, %v780
    %v782 = vrot.slane %v774, %v781
    %783 = vrot.lane.b32.xlu0 %v782, 64
    %v784 = vpop.permute.xlu0 %783
    %786 = vst.msk [vmem:[#allocation3 + $0x2] sm:$0x3] %vm689, %v784
    %v787 = vld [vmem:[#allocation2 + $0x1a] sm:$0x3]
    %v790 = vunpack.c.l.s4 1983009808
    %v791 = vunpack.c.0.s8 %v790
    %v792 = vlaneseq
    %v793 = vshrl.u32 %v792, 7
    %v794 = vsub.s32 %v791, %v793
    %v795 = vrot.slane %v787, %v794
    %796 = vrot.lane.b32.xlu0 %v795, 80
    %v797 = vpop.permute.xlu0 %796
    %799 = vst.msk [vmem:[#allocation3 + $0x2] sm:$0x3] %vm703, %v797
    %v800 = vld [vmem:[#allocation2 + $0x1c] sm:$0x3]
    %v803 = vunpack.c.l.s4 1983009808
    %v804 = vunpack.c.0.s8 %v803
    %v805 = vlaneseq
    %v806 = vshrl.u32 %v805, 7
    %v807 = vsub.s32 %v804, %v806
    %v808 = vrot.slane %v800, %v807
    %809 = vrot.lane.b32.xlu0 %v808, 96
    %v810 = vpop.permute.xlu0 %809
    %812 = vst.msk [vmem:[#allocation3 + $0x2] sm:$0x3] %vm717, %v810
    %v813 = vld [vmem:[#allocation2 + $0x1e] sm:$0x3]
    %v816 = vunpack.c.l.s4 1983009808
    %v817 = vunpack.c.0.s8 %v816
    %v818 = vlaneseq
    %v819 = vshrl.u32 %v818, 7
    %v820 = vsub.s32 %v817, %v819
    %v821 = vrot.slane %v813, %v820
    %822 = vrot.lane.b32.xlu0 %v821, 112
    %v823 = vpop.permute.xlu0 %822
    %825 = vst.msk [vmem:[#allocation3 + $0x2] sm:$0x3] %vm731, %v823
    %v826 = vld [vmem:[#allocation2 + $0x20] sm:$0x3]
    %827 = vst.msk [vmem:[#allocation3 + $0x4] sm:$0x3] %vm631, %v826
    %v828 = vld [vmem:[#allocation2 + $0x22] sm:$0x3]
    %v831 = vunpack.c.l.s4 1983009808
    %v832 = vunpack.c.0.s8 %v831
    %v833 = vlaneseq
    %v834 = vshrl.u32 %v833, 7
    %v835 = vsub.s32 %v832, %v834
    %v836 = vrot.slane %v828, %v835
    %837 = vrot.lane.b32.xlu0 %v836, 16
    %v838 = vpop.permute.xlu0 %837
    %840 = vst.msk [vmem:[#allocation3 + $0x4] sm:$0x3] %vm647, %v838
    %v841 = vld [vmem:[#allocation2 + $0x24] sm:$0x3]
    %v844 = vunpack.c.l.s4 1983009808
    %v845 = vunpack.c.0.s8 %v844
    %v846 = vlaneseq
    %v847 = vshrl.u32 %v846, 7
    %v848 = vsub.s32 %v845, %v847
    %v849 = vrot.slane %v841, %v848
    %850 = vrot.lane.b32.xlu0 %v849, 32
    %v851 = vpop.permute.xlu0 %850
    %853 = vst.msk [vmem:[#allocation3 + $0x4] sm:$0x3] %vm661, %v851
    %v854 = vld [vmem:[#allocation2 + $0x26] sm:$0x3]
    %v857 = vunpack.c.l.s4 1983009808
    %v858 = vunpack.c.0.s8 %v857
    %v859 = vlaneseq
    %v860 = vshrl.u32 %v859, 7
    %v861 = vsub.s32 %v858, %v860
    %v862 = vrot.slane %v854, %v861
    %863 = vrot.lane.b32.xlu0 %v862, 48
    %v864 = vpop.permute.xlu0 %863
    %866 = vst.msk [vmem:[#allocation3 + $0x4] sm:$0x3] %vm675, %v864
    %v867 = vld [vmem:[#allocation2 + $0x28] sm:$0x3]
    %v870 = vunpack.c.l.s4 1983009808
    %v871 = vunpack.c.0.s8 %v870
    %v872 = vlaneseq
    %v873 = vshrl.u32 %v872, 7
    %v874 = vsub.s32 %v871, %v873
    %v875 = vrot.slane %v867, %v874
    %876 = vrot.lane.b32.xlu0 %v875, 64
    %v877 = vpop.permute.xlu0 %876
    %879 = vst.msk [vmem:[#allocation3 + $0x4] sm:$0x3] %vm689, %v877
    %v880 = vld [vmem:[#allocation2 + $0x2a] sm:$0x3]
    %v883 = vunpack.c.l.s4 1983009808
    %v884 = vunpack.c.0.s8 %v883
    %v885 = vlaneseq
    %v886 = vshrl.u32 %v885, 7
    %v887 = vsub.s32 %v884, %v886
    %v888 = vrot.slane %v880, %v887
    %889 = vrot.lane.b32.xlu0 %v888, 80
    %v890 = vpop.permute.xlu0 %889
    %892 = vst.msk [vmem:[#allocation3 + $0x4] sm:$0x3] %vm703, %v890
    %v893 = vld [vmem:[#allocation2 + $0x2c] sm:$0x3]
    %v896 = vunpack.c.l.s4 1983009808
    %v897 = vunpack.c.0.s8 %v896
    %v898 = vlaneseq
    %v899 = vshrl.u32 %v898, 7
    %v900 = vsub.s32 %v897, %v899
    %v901 = vrot.slane %v893, %v900
    %902 = vrot.lane.b32.xlu0 %v901, 96
    %v903 = vpop.permute.xlu0 %902
    %905 = vst.msk [vmem:[#allocation3 + $0x4] sm:$0x3] %vm717, %v903
    %v906 = vld [vmem:[#allocation2 + $0x2e] sm:$0x3]
    %v909 = vunpack.c.l.s4 1983009808
    %v910 = vunpack.c.0.s8 %v909
    %v911 = vlaneseq
    %v912 = vshrl.u32 %v911, 7
    %v913 = vsub.s32 %v910, %v912
    %v914 = vrot.slane %v906, %v913
    %915 = vrot.lane.b32.xlu0 %v914, 112
    %v916 = vpop.permute.xlu0 %915
    %918 = vst.msk [vmem:[#allocation3 + $0x4] sm:$0x3] %vm731, %v916
    %v919 = vld [vmem:[#allocation2 + $0x30] sm:$0x3]
    %920 = vst.msk [vmem:[#allocation3 + $0x6] sm:$0x3] %vm631, %v919
    %v921 = vld [vmem:[#allocation3] sm:$0xff]
    %v923 = vcombine.high %v921, %v921
    %v925 = vunpack.c.l.s4 1983009808
    %v926 = vunpack.c.0.s8 %v925
    %v927 = vlaneseq
    %v928 = vshrl.u32 %v927, 7
    %v929 = vsub.s32 %v926, %v928
    %v930 = vrot.slane %v921, %v929
    %v932 = vunpack.c.l.s4 1983009808
    %v933 = vunpack.c.0.s8 %v932
    %v934 = vlaneseq
    %v935 = vshrl.u32 %v934, 7
    %v936 = vsub.s32 %v933, %v935
    %v937 = vrot.slane %v923, %v936
    %v938 = vcombine.high %v930, %v930
    %v939 = vcombine.high %v937, %v937
    %v944 = vpack.c.bf16 %v930, %v930
    %v945 = vpack.c.bf16 %v938, %v938
    %v946 = vpack.c.bf16 %v937, %v937
    %v947 = vpack.c.bf16 %v939, %v939
    %v948 = vld [vmem:[%s3] sm:$0xf]
    %v949 = vld [vmem:[%s3 + $0x4] sm:$0xf]
    %v950 = vld [vmem:[%s3 + $0x8] sm:$0xf]
    %v951 = vld [vmem:[%s3 + $0xc] sm:$0xf]
    %v952 = vld [vmem:[%s3 + $0x10] sm:$0xf]
    %v953 = vld [vmem:[%s3 + $0x14] sm:$0xf]
    %v954 = vld [vmem:[%s3 + $0x18] sm:$0xf]
    %v955 = vld [vmem:[%s3 + $0x1c] sm:$0xf]
    %v956 = vld [vmem:[%s3 + $0x20] sm:$0xf]
    %v957 = vld [vmem:[%s3 + $0x24] sm:$0xf]
    %v958 = vld [vmem:[%s3 + $0x28] sm:$0xf]
    %v959 = vld [vmem:[%s3 + $0x2c] sm:$0xf]
    %v960 = vld [vmem:[%s3 + $0x30] sm:$0xf]
    %v961 = vld [vmem:[%s3 + $0x34] sm:$0xf]
    %v962 = vld [vmem:[%s3 + $0x38] sm:$0xf]
    %v963 = vld [vmem:[%s3 + $0x3c] sm:$0xf]
    %v964 = vld [vmem:[%s3 + $0x40] sm:$0xf]
    %v965 = vld [vmem:[%s3 + $0x44] sm:$0xf]
    %v966 = vld [vmem:[%s3 + $0x48] sm:$0xf]
    %v967 = vld [vmem:[%s3 + $0x4c] sm:$0xf]
    %v968 = vld [vmem:[%s3 + $0x50] sm:$0xf]
    %v969 = vld [vmem:[%s3 + $0x54] sm:$0xf]
    %v970 = vld [vmem:[%s3 + $0x58] sm:$0xf]
    %v971 = vld [vmem:[%s3 + $0x5c] sm:$0xf]
    %v972 = vld [vmem:[%s3 + $0x60] sm:$0xf]
    %v973 = vld [vmem:[%s3 + $0x64] sm:$0xf]
    %v974 = vld [vmem:[%s3 + $0x68] sm:$0xf]
    %v975 = vld [vmem:[%s3 + $0x6c] sm:$0xf]
    %v976 = vld [vmem:[%s3 + $0x70] sm:$0xf]
    %v977 = vld [vmem:[%s3 + $0x74] sm:$0xf]
    %v978 = vld [vmem:[%s3 + $0x78] sm:$0xf]
    %v979 = vld [vmem:[%s3 + $0x7c] sm:$0xf]
    %v980 = vld [vmem:[%s3 + $0x80] sm:$0xf]
    %v981 = vld [vmem:[%s3 + $0x84] sm:$0xf]
    %v982 = vld [vmem:[%s3 + $0x88] sm:$0xf]
    %v983 = vld [vmem:[%s3 + $0x8c] sm:$0xf]
    %v984 = vld [vmem:[%s3 + $0x90] sm:$0xf]
    %v985 = vld [vmem:[%s3 + $0x94] sm:$0xf]
    %v986 = vld [vmem:[%s3 + $0x98] sm:$0xf]
    %v987 = vld [vmem:[%s3 + $0x9c] sm:$0xf]
    %v988 = vld [vmem:[%s3 + $0xa0] sm:$0xf]
    %v989 = vld [vmem:[%s3 + $0xa4] sm:$0xf]
    %v990 = vld [vmem:[%s3 + $0xa8] sm:$0xf]
    %v991 = vld [vmem:[%s3 + $0xac] sm:$0xf]
    %v992 = vld [vmem:[%s3 + $0xb0] sm:$0xf]
    %v993 = vld [vmem:[%s3 + $0xb4] sm:$0xf]
    %v994 = vld [vmem:[%s3 + $0xb8] sm:$0xf]
    %v995 = vld [vmem:[%s3 + $0xbc] sm:$0xf]
    %v996 = vld [vmem:[%s3 + $0xc0] sm:$0xf]
    %v997 = vld [vmem:[%s3 + $0xc4] sm:$0xf]
    %v998 = vld [vmem:[%s4] sm:$0x1]
    %v1000 = vlaneseq
    %v1001 = vshrl.u32 %v1000, 7
    %v1002 = vsub.s32 0, %v1001
    %v1003 = vrot.slane %v998, %v1002
    %v1055 = vunpack.c.l.b16 %v948
    %v1056 = vunpack.c.l.b16 %v949
    %v1057 = vunpack.c.l.b16 %v950
    %v1058 = vunpack.c.l.b16 %v951
    %v1059 = vunpack.c.l.b16 %v952
    %v1060 = vunpack.c.l.b16 %v953
    %v1061 = vunpack.c.l.b16 %v954
    %v1062 = vunpack.c.l.b16 %v955
    %v1063 = vunpack.c.l.b16 %v956
    %v1064 = vunpack.c.l.b16 %v957
    %v1065 = vunpack.c.l.b16 %v958
    %v1066 = vunpack.c.l.b16 %v959
    %v1067 = vunpack.c.l.b16 %v960
    %v1068 = vunpack.c.l.b16 %v961
    %v1069 = vunpack.c.l.b16 %v962
    %v1070 = vunpack.c.l.b16 %v963
    %v1071 = vunpack.c.l.b16 %v964
    %v1072 = vunpack.c.l.b16 %v965
    %v1073 = vunpack.c.l.b16 %v966
    %v1074 = vunpack.c.l.b16 %v967
    %v1075 = vunpack.c.l.b16 %v968
    %v1076 = vunpack.c.l.b16 %v969
    %v1077 = vunpack.c.l.b16 %v970
    %v1078 = vunpack.c.l.b16 %v971
    %v1079 = vunpack.c.l.b16 %v972
    %v1080 = vunpack.c.l.b16 %v973
    %v1081 = vunpack.c.l.b16 %v974
    %v1082 = vunpack.c.l.b16 %v975
    %v1083 = vunpack.c.l.b16 %v976
    %v1084 = vunpack.c.l.b16 %v977
    %v1085 = vunpack.c.l.b16 %v978
    %v1086 = vunpack.c.l.b16 %v979
    %v1087 = vunpack.c.l.b16 %v980
    %v1088 = vunpack.c.l.b16 %v981
    %v1089 = vunpack.c.l.b16 %v982
    %v1090 = vunpack.c.l.b16 %v983
    %v1091 = vunpack.c.l.b16 %v984
    %v1092 = vunpack.c.l.b16 %v985
    %v1093 = vunpack.c.l.b16 %v986
    %v1094 = vunpack.c.l.b16 %v987
    %v1095 = vunpack.c.l.b16 %v988
    %v1096 = vunpack.c.l.b16 %v989
    %v1097 = vunpack.c.l.b16 %v990
    %v1098 = vunpack.c.l.b16 %v991
    %v1099 = vunpack.c.l.b16 %v992
    %v1100 = vunpack.c.l.b16 %v993
    %v1101 = vunpack.c.l.b16 %v994
    %v1102 = vunpack.c.l.b16 %v995
    %v1103 = vunpack.c.l.b16 %v996
    %v1104 = vunpack.c.l.b16 %v997
    %v1105 = vpack.c.b16 %v1056, %v1055
    %v1106 = vpack.c.b16 %v1058, %v1057
    %v1107 = vpack.c.b16 %v1060, %v1059
    %v1108 = vpack.c.b16 %v1062, %v1061
    %v1109 = vpack.c.b16 %v1064, %v1063
    %v1110 = vpack.c.b16 %v1066, %v1065
    %v1111 = vpack.c.b16 %v1068, %v1067
    %v1112 = vpack.c.b16 %v1070, %v1069
    %v1113 = vpack.c.b16 %v1072, %v1071
    %v1114 = vpack.c.b16 %v1074, %v1073
    %v1115 = vpack.c.b16 %v1076, %v1075
    %v1116 = vpack.c.b16 %v1078, %v1077
    %v1117 = vpack.c.b16 %v1080, %v1079
    %v1118 = vpack.c.b16 %v1082, %v1081
    %v1119 = vpack.c.b16 %v1084, %v1083
    %v1120 = vpack.c.b16 %v1086, %v1085
    %v1121 = vpack.c.b16 %v1088, %v1087
    %v1122 = vpack.c.b16 %v1090, %v1089
    %v1123 = vpack.c.b16 %v1092, %v1091
    %v1124 = vpack.c.b16 %v1094, %v1093
    %v1125 = vpack.c.b16 %v1096, %v1095
    %v1126 = vpack.c.b16 %v1098, %v1097
    %v1127 = vpack.c.b16 %v1100, %v1099
    %v1128 = vpack.c.b16 %v1102, %v1101
    %v1129 = vpack.c.b16 %v1104, %v1103
    %v1156 = vsel %vm624, %v947, 0
    %1158 = vmatprep.subr.bf16.mxu0 0
    %1159 = vmatpush1.bf16.msra.mxu0 %v1105
    %1160 = vmatprep.subr.bf16.mxu0 0
    %1161 = vmatpush1.bf16.msra.mxu0 %v1106
    %1162 = vmatprep.subr.bf16.mxu0 0
    %1163 = vmatpush1.bf16.msra.mxu0 %v1107
    %1164 = vmatprep.subr.bf16.mxu0 0
    %1165 = vmatpush1.bf16.msra.mxu0 %v1108
    %1166 = vmatprep.subr.bf16.mxu0 0
    %1167 = vmatpush1.bf16.msra.mxu0 %v1109
    %1168 = vmatprep.subr.bf16.mxu0 0
    %1169 = vmatpush1.bf16.msra.mxu0 %v1110
    %1170 = vmatprep.subr.bf16.mxu0 0
    %1171 = vmatpush1.bf16.msra.mxu0 %v1111
    %1172 = vmatprep.subr.bf16.mxu0 0
    %1173 = vmatpush1.bf16.msra.mxu0 %v1112
    %1174 = vmatprep.subr.bf16.mxu0 0
    %1175 = vmatpush1.bf16.msra.mxu0 %v1113
    %1176 = vmatprep.subr.bf16.mxu0 0
    %1177 = vmatpush1.bf16.msra.mxu0 %v1114
    %1178 = vmatprep.subr.bf16.mxu0 0
    %1179 = vmatpush1.bf16.msra.mxu0 %v1115
    %1180 = vmatprep.subr.bf16.mxu0 0
    %1181 = vmatpush1.bf16.msra.mxu0 %v1116
    %1182 = vmatprep.subr.bf16.mxu0 0
    %1183 = vmatpush1.bf16.msra.mxu0 %v1117
    %1184 = vmatprep.subr.bf16.mxu0 0
    %1185 = vmatpush1.bf16.msra.mxu0 %v1118
    %1186 = vmatprep.subr.bf16.mxu0 0
    %1187 = vmatpush1.bf16.msra.mxu0 %v1119
    %1188 = vmatprep.subr.bf16.mxu0 0
    %1189 = vmatpush1.bf16.msra.mxu0 %v1120
    %1190 = vmatprep.mubr.bf16.mxu0 %v945
    %1191 = vmatmul.mubr.bf16.gmra.mrb[0].mxu0 %v944
    %v1192 = vpop.f32.mrb[0].mxu0
    %v1193 = vadd.f32 %v1003, %v1192
    %v1194 = vpop.f32.mrb[0].mxu0
    %v1195 = vpop.f32.mrb[0].mxu0
    %v1196 = vpop.f32.mrb[0].mxu0
    %1197 = vdwg.mxu0
    %1198 = vmatprep.subr.bf16.mxu0 0
    %1199 = vmatpush1.bf16.msra.mxu0 %v1121
    %1200 = vmatprep.subr.bf16.mxu0 0
    %1201 = vmatpush1.bf16.msra.mxu0 %v1122
    %1202 = vmatprep.subr.bf16.mxu0 0
    %1203 = vmatpush1.bf16.msra.mxu0 %v1123
    %1204 = vmatprep.subr.bf16.mxu0 0
    %1205 = vmatpush1.bf16.msra.mxu0 %v1124
    %1206 = vmatprep.subr.bf16.mxu0 0
    %1207 = vmatpush1.bf16.msra.mxu0 %v1125
    %1208 = vmatprep.subr.bf16.mxu0 0
    %1209 = vmatpush1.bf16.msra.mxu0 %v1126
    %1210 = vmatprep.subr.bf16.mxu0 0
    %1211 = vmatpush1.bf16.msra.mxu0 %v1127
    %1212 = vmatprep.subr.bf16.mxu0 0
    %1213 = vmatpush1.bf16.msra.mxu0 %v1128
    %1214 = vmatprep.subr.bf16.mxu0 0
    %1215 = vmatpush1.bf16.msra.mxu0 %v1129
    %1216 = vmatprep.subr.bf16.mxu0 0
    %1217 = vmatpush1.bf16.msra.mxu0 0
    %1218 = vmatprep.subr.bf16.mxu0 0
    %1219 = vmatpush1.bf16.msra.mxu0 0
    %1220 = vmatprep.subr.bf16.mxu0 0
    %1221 = vmatpush1.bf16.msra.mxu0 0
    %1222 = vmatprep.subr.bf16.mxu0 0
    %1223 = vmatpush1.bf16.msra.mxu0 0
    %1224 = vmatprep.subr.bf16.mxu0 0
    %1225 = vmatpush1.bf16.msra.mxu0 0
    %1226 = vmatprep.subr.bf16.mxu0 0
    %1227 = vmatpush1.bf16.msra.mxu0 0
    %1228 = vmatprep.subr.bf16.mxu0 0
    %1229 = vmatpush1.bf16.msra.mxu0 0
    %1230 = vmatprep.mubr.bf16.mxu0 %v1156
    %1231 = vmatmul.mubr.bf16.gmra.mrb[0].mxu0 %v946
    %v1232 = vpop.f32.mrb[0].mxu0
    %v1233 = vadd.f32 %v1193, %v1232
    %v1234 = vpop.f32.mrb[0].mxu0
    %v1235 = vpop.f32.mrb[0].mxu0
    %v1236 = vpop.f32.mrb[0].mxu0
    %1237 = vdwg.mxu0
    %v1238 = vmax.f32 %v1233, 0.0
    %v1239 = vpack.c.bf16 %v1238, %v1238
    %v1240 = vld [vmem:[%s5] sm:$0xf]
    %v1241 = vld [vmem:[%s5 + $0x4] sm:$0xf]
    %v1242 = vld [vmem:[%s5 + $0x8] sm:$0xf]
    %v1243 = vld [vmem:[%s5 + $0xc] sm:$0xf]
    %v1244 = vld [vmem:[%s5 + $0x10] sm:$0xf]
    %v1245 = vld [vmem:[%s5 + $0x14] sm:$0xf]
    %v1246 = vld [vmem:[%s5 + $0x18] sm:$0xf]
    %v1247 = vld [vmem:[%s5 + $0x1c] sm:$0xf]
    %v1248 = vld [vmem:[%s5 + $0x20] sm:$0xf]
    %v1249 = vld [vmem:[%s5 + $0x24] sm:$0xf]
    %v1250 = vld [vmem:[%s5 + $0x28] sm:$0xf]
    %v1251 = vld [vmem:[%s5 + $0x2c] sm:$0xf]
    %v1252 = vld [vmem:[%s5 + $0x30] sm:$0xf]
    %v1253 = vld [vmem:[%s5 + $0x34] sm:$0xf]
    %v1254 = vld [vmem:[%s5 + $0x38] sm:$0xf]
    %v1255 = vld [vmem:[%s6] sm:$0x1]
    %v1257 = vlaneseq
    %v1258 = vshrl.u32 %v1257, 7
    %v1259 = vsub.s32 0, %v1258
    %v1260 = vrot.slane %v1255, %v1259
    %v1277 = vunpack.c.l.b16 %v1240
    %v1278 = vunpack.c.l.b16 %v1241
    %v1279 = vunpack.c.l.b16 %v1242
    %v1280 = vunpack.c.l.b16 %v1243
    %v1281 = vunpack.c.l.b16 %v1244
    %v1282 = vunpack.c.l.b16 %v1245
    %v1283 = vunpack.c.l.b16 %v1246
    %v1284 = vunpack.c.l.b16 %v1247
    %v1285 = vunpack.c.l.b16 %v1248
    %v1286 = vunpack.c.l.b16 %v1249
    %v1287 = vunpack.c.l.b16 %v1250
    %v1288 = vunpack.c.l.b16 %v1251
    %v1289 = vunpack.c.l.b16 %v1252
    %v1290 = vunpack.c.l.b16 %v1253
    %v1291 = vunpack.c.l.b16 %v1254
    %v1292 = vpack.c.b16 %v1278, %v1277
    %v1293 = vpack.c.b16 %v1280, %v1279
    %v1294 = vpack.c.b16 %v1282, %v1281
    %v1295 = vpack.c.b16 %v1284, %v1283
    %v1296 = vpack.c.b16 %v1286, %v1285
    %v1297 = vpack.c.b16 %v1288, %v1287
    %v1298 = vpack.c.b16 %v1290, %v1289
    %v1299 = vpack.c.b16 %v1291, %v1291
    %vm1307 = vcmask 982016
    %v1309 = vsel %vm1307, %v1239, 0
    %vm1311 = vcmask 1043456
    %v1313 = vsel %vm1311, %v1299, 0
    %1315 = vmatprep.subr.bf16.mxu0 0
    %1316 = vmatpush1.bf16.msra.mxu0 %v1292
    %1317 = vmatprep.subr.bf16.mxu0 0
    %1318 = vmatpush1.bf16.msra.mxu0 %v1293
    %1319 = vmatprep.subr.bf16.mxu0 0
    %1320 = vmatpush1.bf16.msra.mxu0 %v1294
    %1321 = vmatprep.subr.bf16.mxu0 0
    %1322 = vmatpush1.bf16.msra.mxu0 %v1295
    %1323 = vmatprep.subr.bf16.mxu0 0
    %1324 = vmatpush1.bf16.msra.mxu0 %v1296
    %1325 = vmatprep.subr.bf16.mxu0 0
    %1326 = vmatpush1.bf16.msra.mxu0 %v1297
    %1327 = vmatprep.subr.bf16.mxu0 0
    %1328 = vmatpush1.bf16.msra.mxu0 %v1298
    %1329 = vmatprep.subr.bf16.mxu0 0
    %1330 = vmatpush1.bf16.msra.mxu0 %v1313
    %1331 = vmatprep.subr.bf16.mxu0 0
    %1332 = vmatpush1.bf16.msra.mxu0 0
    %1333 = vmatprep.subr.bf16.mxu0 0
    %1334 = vmatpush1.bf16.msra.mxu0 0
    %1335 = vmatprep.subr.bf16.mxu0 0
    %1336 = vmatpush1.bf16.msra.mxu0 0
    %1337 = vmatprep.subr.bf16.mxu0 0
    %1338 = vmatpush1.bf16.msra.mxu0 0
    %1339 = vmatprep.subr.bf16.mxu0 0
    %1340 = vmatpush1.bf16.msra.mxu0 0
    %1341 = vmatprep.subr.bf16.mxu0 0
    %1342 = vmatpush1.bf16.msra.mxu0 0
    %1343 = vmatprep.subr.bf16.mxu0 0
    %1344 = vmatpush1.bf16.msra.mxu0 0
    %1345 = vmatprep.subr.bf16.mxu0 0
    %1346 = vmatpush1.bf16.msra.mxu0 0
    %1347 = vmatprep.mubr.bf16.mxu0 0
    %1348 = vmatmul.mubr.bf16.gmra.mrb[0].mxu0 %v1309
    %v1349 = vpop.f32.mrb[0].mxu0
    %v1350 = vadd.f32 %v1260, %v1349
    %v1351 = vpop.f32.mrb[0].mxu0
    %v1352 = vpop.f32.mrb[0].mxu0
    %v1353 = vpop.f32.mrb[0].mxu0
    %1354 = vdwg.mxu0
    %v1355 = vmax.f32 %v1350, 0.0
    %v1356 = vpack.c.bf16 %v1355, %v1355
    %v1357 = vld [vmem:[%s7] sm:$0xf]
    %v1358 = vld [vmem:[%s7 + $0x4] sm:$0xf]
    %v1359 = vld [vmem:[%s7 + $0x8] sm:$0xf]
    %v1360 = vld [vmem:[%s7 + $0xc] sm:$0xf]
    %v1361 = vld [vmem:[%s7 + $0x10] sm:$0xf]
    %v1362 = vld [vmem:[%s7 + $0x14] sm:$0xf]
    %v1363 = vld [vmem:[%s7 + $0x18] sm:$0xf]
    %v1364 = vld [vmem:[%s7 + $0x1c] sm:$0xf]
    %v1365 = vld [vmem:[%s7 + $0x20] sm:$0xf]
    %v1366 = vld [vmem:[%s7 + $0x24] sm:$0xf]
    %v1367 = vld [vmem:[%s7 + $0x28] sm:$0x3]
    %v1368 = vld [vmem:[%s8] sm:$0x1]
    %v1370 = vlaneseq
    %v1371 = vshrl.u32 %v1370, 7
    %v1372 = vsub.s32 0, %v1371
    %v1373 = vrot.slane %v1368, %v1372
    %v1386 = vunpack.c.l.b16 %v1357
    %v1387 = vunpack.c.l.b16 %v1358
    %v1388 = vunpack.c.l.b16 %v1359
    %v1389 = vunpack.c.l.b16 %v1360
    %v1390 = vunpack.c.l.b16 %v1361
    %v1391 = vunpack.c.l.b16 %v1362
    %v1392 = vunpack.c.l.b16 %v1363
    %v1393 = vunpack.c.l.b16 %v1364
    %v1394 = vunpack.c.l.b16 %v1365
    %v1395 = vunpack.c.l.b16 %v1366
    %v1396 = vunpack.c.l.b16 %v1367
    %v1397 = vpack.c.b16 %v1387, %v1386
    %v1398 = vpack.c.b16 %v1389, %v1388
    %v1399 = vpack.c.b16 %v1391, %v1390
    %v1400 = vpack.c.b16 %v1393, %v1392
    %v1401 = vpack.c.b16 %v1395, %v1394
    %v1402 = vpack.c.b16 %v1396, %v1396
    %vm1408 = vcmask 687104
    %v1410 = vsel %vm1408, %v1356, 0
    %vm1412 = vcmask 1041408
    %v1414 = vsel %vm1412, %v1402, 0
    %1416 = vmatprep.subr.bf16.mxu0 0
    %1417 = vmatpush1.bf16.msra.mxu0 %v1397
    %1418 = vmatprep.subr.bf16.mxu0 0
    %1419 = vmatpush1.bf16.msra.mxu0 %v1398
    %1420 = vmatprep.subr.bf16.mxu0 0
    %1421 = vmatpush1.bf16.msra.mxu0 %v1399
    %1422 = vmatprep.subr.bf16.mxu0 0
    %1423 = vmatpush1.bf16.msra.mxu0 %v1400
    %1424 = vmatprep.subr.bf16.mxu0 0
    %1425 = vmatpush1.bf16.msra.mxu0 %v1401
    %1426 = vmatprep.subr.bf16.mxu0 0
    %1427 = vmatpush1.bf16.msra.mxu0 %v1414
    %1428 = vmatprep.subr.bf16.mxu0 0
    %1429 = vmatpush1.bf16.msra.mxu0 0
    %1430 = vmatprep.subr.bf16.mxu0 0
    %1431 = vmatpush1.bf16.msra.mxu0 0
    %1432 = vmatprep.subr.bf16.mxu0 0
    %1433 = vmatpush1.bf16.msra.mxu0 0
    %1434 = vmatprep.subr.bf16.mxu0 0
    %1435 = vmatpush1.bf16.msra.mxu0 0
    %1436 = vmatprep.subr.bf16.mxu0 0
    %1437 = vmatpush1.bf16.msra.mxu0 0
    %1438 = vmatprep.subr.bf16.mxu0 0
    %1439 = vmatpush1.bf16.msra.mxu0 0
    %1440 = vmatprep.subr.bf16.mxu0 0
    %1441 = vmatpush1.bf16.msra.mxu0 0
    %1442 = vmatprep.subr.bf16.mxu0 0
    %1443 = vmatpush1.bf16.msra.mxu0 0
    %1444 = vmatprep.subr.bf16.mxu0 0
    %1445 = vmatpush1.bf16.msra.mxu0 0
    %1446 = vmatprep.subr.bf16.mxu0 0
    %1447 = vmatpush1.bf16.msra.mxu0 0
    %1448 = vmatprep.mubr.bf16.mxu0 0
    %1449 = vmatmul.mubr.bf16.gmra.mrb[0].mxu0 %v1410
    %v1450 = vpop.f32.mrb[0].mxu0
    %v1451 = vadd.f32 %v1373, %v1450
    %v1452 = vpop.f32.mrb[0].mxu0
    %v1453 = vpop.f32.mrb[0].mxu0
    %v1454 = vpop.f32.mrb[0].mxu0
    %1455 = vdwg.mxu0
    %vm1456 = vcmask 74752
    %1457 = vst.msk [vmem:[#allocation4] sm:$0x3] %vm1456, %v1451
    // Predicated region
    $region38: #{convnet_forward.3} parent=1 // pred_check
      _
    $region39: #{convnet_forward.3} parent=1 // pred_check_branch
      %1459 = sbr.rel (0) target = $region41
    $region40: #{convnet_forward.3} parent=1 // pred_region
      %s1461 = ssub.s32 32, 32
      %1462 = vsyncadd [#allocation5], %s1461
      %s1464 = sshll.u32 [#allocation4], 4
      %s1465 = int_to_ptr.vmem [resolvable:$true] %s1464
      %1467 = dma.vmem_to_hbm [thread:$0]  %s1465, 32, %s9, [#allocation5]
    $region41: #{convnet_forward.3} parent=1 // pred_fallthru
      _
    // Predicated region
    $region42: #{convnet_forward.3} parent=1 // pred_check
      _
    $region43: #{convnet_forward.3} parent=1 // pred_check_branch
      %1469 = sbr.rel (0) target = $region45
    $region44: #{convnet_forward.3} parent=1 // pred_region
      %1470 = dma.done [#allocation5], 32
    $region45: #{convnet_forward.3} parent=1 // pred_fallthru
      _
    %1471 = vsyncpa [#allocation5], 1

</llo_original>
